<compile_context>
chip_gen: v7x
topology: tpu7x:2x2x1
jax: 0.10.0
libtpu: 0.0.40
codegen_flags: <defaults>
</compile_context>

<pallas_src>
import jax
import jax.numpy as jnp
from jax import lax
from jax.experimental import pallas as pl
from jax.experimental.pallas import tpu as pltpu

HIDDEN = 32
EMB_DIM = 16
VOCAB = 50


def _contextual_lstm_kernel(tok_ref, len_ref, embw_ref, whh_ref,
                            w1_ref, b1_ref, w2_ref, b2_ref, w3_ref, b3_ref,
                            out_ref):
    TB = tok_ref.shape[0]
    B = len_ref.shape[0]
    T = TB // B
    H = whh_ref.shape[0]
    V = embw_ref.shape[0]          # vocab padded to a multiple of 8

    # ---- hoisted, loop-invariant loads ----
    tok = tok_ref[...]             # [T*B, 1] int32, time-major (row t*B + b)
    lens = len_ref[...]            # [B, 1] int32
    whh = whh_ref[...]             # [H, 4H]

    # Fused embedding lookup + input projection (+ bias, pre-folded into embw):
    #   emb[tok] @ Wih^T + b  ==  one_hot(tok) @ (emb @ Wih^T + b)
    # One MXU pass for all T*B tokens, hoisted out of the recurrence.
    onehot = (tok == lax.broadcasted_iota(jnp.int32, (TB, V), 1)).astype(jnp.float32)
    gx_all = jnp.dot(onehot, embw_ref[...],
                     preferred_element_type=jnp.float32)          # [T*B, 4H]

    # ---- fully unrolled recurrence; h/c live in vregs (no scratch) ----
    h = jnp.zeros((B, H), jnp.float32)
    c = jnp.zeros((B, H), jnp.float32)
    for t in range(T):             # static unroll: full scheduler visibility
        gates = gx_all[t * B:(t + 1) * B, :] + jnp.dot(
            h, whh, preferred_element_type=jnp.float32)           # [B, 4H]
        # gate columns pre-ordered (i, f, o, g): one sigmoid slab, one tanh slab
        sig = jax.nn.sigmoid(gates[:, :3 * H])                    # [B, 3H]
        g_g = jnp.tanh(gates[:, 3 * H:])                          # [B, H]
        i_g = sig[:, :H]
        f_g = sig[:, H:2 * H]
        o_g = sig[:, 2 * H:3 * H]
        c_new = f_g * c + i_g * g_g
        h_new = o_g * jnp.tanh(c_new)
        # Packed-sequence semantics: state freezes once t >= lengths[b].
        live = lens > t                                           # [B, 1] bool
        h = jnp.where(live, h_new, h)
        c = jnp.where(live, c_new, c)

    # ---- fused MLP head on the final hidden state ----
    z1 = jnp.maximum(jnp.dot(h, w1_ref[...],
                             preferred_element_type=jnp.float32) + b1_ref[...], 0.0)
    z2 = jnp.maximum(jnp.dot(z1, w2_ref[...],
                             preferred_element_type=jnp.float32) + b2_ref[...], 0.0)
    z3 = jnp.dot(z2, w3_ref[...],
                 preferred_element_type=jnp.float32) + b3_ref[...]
    out_ref[...] = jax.nn.sigmoid(z3)                             # [B, 1]


def contextual_lstm_forward(padded, lengths, kp):
    """padded: [B, T] int32 token ids, lengths: [B] int32. Returns [B] f32."""
    B, T = padded.shape
    Vp, G4 = kp["embw"].shape
    H = kp["whh_t"].shape[0]

    # Tiny int token matrix flattened time-major (row t*B + b); the heavy
    # [T,B,E] activation tensor of the old version is never materialized.
    tok_tm = jnp.transpose(padded).reshape(T * B, 1).astype(jnp.int32)
    len2d = lengths.astype(jnp.int32).reshape(B, 1)

    full = lambda shp: pl.BlockSpec(shp, lambda i: (0,) * len(shp))

    out = pl.pallas_call(
        _contextual_lstm_kernel,
        out_shape=jax.ShapeDtypeStruct((B, 1), jnp.float32),
        grid_spec=pltpu.PrefetchScalarGridSpec(
            num_scalar_prefetch=0,
            grid=(1,),                                   # single step: whole model fused
            in_specs=[
                full((T * B, 1)),                        # token ids (time-major)
                full((B, 1)),                            # lengths
                full((Vp, G4)),                          # emb @ Wih^T + b   [Vpad, 4H]
                full((H, G4)),                           # Whh^T             [H, 4H]
                full((H, 128)), full((1, 128)),          # head layer 1
                full((128, 64)), full((1, 64)),          # head layer 2
                full((64, 1)), full((1, 1)),             # head layer 3
            ],
            out_specs=pl.BlockSpec((B, 1), lambda i: (0, 0)),
            scratch_shapes=[],
        ),
        compiler_params=pltpu.CompilerParams(
            dimension_semantics=("arbitrary",)),
    )(tok_tm, len2d,
      kp["embw"], kp["whh_t"],
      kp["w1_t"], kp["b1"], kp["w2_t"], kp["b2"], kp["w3_t"], kp["b3"])
    return out.reshape(B)


def init_params(key):
    """PyTorch-convention parameters (weights as nn.LSTM / nn.Linear store them)."""
    ks = jax.random.split(key, 11)
    H, E = HIDDEN, EMB_DIM
    n = lambda k, shp, s=0.1: (s * jax.random.normal(k, shp)).astype(jnp.float32)
    return {
        "embedding": n(ks[0], (VOCAB, E), 0.5),
        "w_ih": n(ks[1], (4 * H, E)),    # weight_ih_l0, row blocks (i, f, g, o)
        "w_hh": n(ks[2], (4 * H, H)),    # weight_hh_l0
        "b_ih": n(ks[3], (4 * H,)),
        "b_hh": n(ks[4], (4 * H,)),
        "w1": n(ks[5], (128, H)), "b1": n(ks[6], (128,)),
        "w2": n(ks[7], (64, 128)), "b2": n(ks[8], (64,)),
        "w3": n(ks[9], (1, 64)), "b3": n(ks[10], (1,)),
    }


def pack_kernel_params(p):
    """One-time constant folding into the kernel-ready layout."""
    H = HIDDEN

    def reorder(w4h):  # columns blocked (i,f,g,o) -> (i,f,o,g)
        i, f, g, o = jnp.split(w4h, 4, axis=-1)
        return jnp.concatenate([i, f, o, g], axis=-1)

    wih_t = reorder(p["w_ih"].T)                       # [E, 4H]
    whh_t = reorder(p["w_hh"].T)                       # [H, 4H]
    b = reorder((p["b_ih"] + p["b_hh"])[None, :])      # [1, 4H]

    # Fold embedding lookup + input projection + bias:
    #   emb[tok] @ Wih^T + b  ==  one_hot(tok) @ (emb @ Wih^T + b)
    embw = jnp.dot(p["embedding"], wih_t,
                   precision=jax.lax.Precision.HIGHEST) + b       # [VOCAB, 4H]
    # Zero-pad vocab rows to a multiple of 8 (sublane alignment; exact: tokens
    # never index the pad rows and the pad rows are zero).
    V = embw.shape[0]
    Vp = ((V + 7) // 8) * 8
    embw = jnp.pad(embw, ((0, Vp - V), (0, 0)))

    f32 = lambda a: a.astype(jnp.float32)
    return {
        "embw": f32(embw),
        "whh_t": f32(whh_t),
        "w1_t": f32(p["w1"].T), "b1": f32(p["b1"].reshape(1, -1)),
        "w2_t": f32(p["w2"].T), "b2": f32(p["b2"].reshape(1, -1)),
        "w3_t": f32(p["w3"].T), "b3": f32(p["b3"].reshape(1, -1)),
    }


def ref_forward(padded, lengths, p):
    """Pure-JAX reference mirroring the PyTorch module structure."""
    H = HIDDEN
    with jax.default_matmul_precision("float32"):
        emb = jnp.take(p["embedding"], padded, axis=0)            # [B, T, E]
        x = jnp.transpose(emb, (1, 0, 2)).astype(jnp.float32)     # [T, B, E]
        T, B, _ = x.shape
        wih_t, whh_t = p["w_ih"].T, p["w_hh"].T
        b = (p["b_ih"] + p["b_hh"])[None, :]

        def step(carry, inp):
            h, c = carry
            x_t, t = inp
            gates = x_t @ wih_t + h @ whh_t + b                   # (i, f, g, o)
            i_g = jax.nn.sigmoid(gates[:, :H])
            f_g = jax.nn.sigmoid(gates[:, H:2 * H])
            g_g = jnp.tanh(gates[:, 2 * H:3 * H])
            o_g = jax.nn.sigmoid(gates[:, 3 * H:])
            c_new = f_g * c + i_g * g_g
            h_new = o_g * jnp.tanh(c_new)
            m = (lengths > t)[:, None]
            return (jnp.where(m, h_new, h), jnp.where(m, c_new, c)), None

        (h, _), _ = lax.scan(
            step,
            (jnp.zeros((B, H), jnp.float32), jnp.zeros((B, H), jnp.float32)),
            (x, jnp.arange(T, dtype=jnp.int32)))
        z1 = jax.nn.relu(h @ p["w1"].T + p["b1"])
        z2 = jax.nn.relu(z1 @ p["w2"].T + p["b2"])
        z3 = jax.nn.sigmoid(z2 @ p["w3"].T + p["b3"])
        return z3.reshape(B)


if __name__ == "__main__":
    key = jax.random.PRNGKey(0)
    pkey, dkey = jax.random.split(key)
    params = init_params(pkey)
    kparams = pack_kernel_params(params)        # one-time weight folding

    B, T = 8, 8
    # Lengths sorted descending (pack_padded_sequence enforce_sorted=True);
    # the per-row freeze mask does not actually require sorting.
    lengths = jnp.array([8, 7, 7, 6, 5, 4, 2, 1], dtype=jnp.int32)
    tokens = jax.random.randint(dkey, (B, T), 1, VOCAB, dtype=jnp.int32)
    pos = jnp.arange(T, dtype=jnp.int32)[None, :]
    padded = jnp.where(pos < lengths[:, None], tokens, 0)   # pad token id = 0

    out = contextual_lstm_forward(padded, lengths, kparams)
    jax.block_until_ready(out)

    ref = ref_forward(padded, lengths, params)
    assert out.shape == (B,)
    # Tolerance accounts for different matmul association/precision between the
    # fused in-kernel path and the XLA reference; semantic bugs would be >1e-2.
    assert jnp.allclose(out, ref, rtol=2e-3, atol=2e-3), (out, ref)
    print("KERNEL_OK")
</pallas_src>

<mosaic_0001>
module attributes {stable_mosaic.version = 11 : i64} {
  func.func @_contextual_lstm_kernel(%arg0: i32, %arg1: memref<64x1xi32, #tpu.memory_space<vmem>>, %arg2: memref<8x1xi32, #tpu.memory_space<vmem>>, %arg3: memref<56x128xf32, #tpu.memory_space<vmem>>, %arg4: memref<32x128xf32, #tpu.memory_space<vmem>>, %arg5: memref<32x128xf32, #tpu.memory_space<vmem>>, %arg6: memref<1x128xf32, #tpu.memory_space<vmem>>, %arg7: memref<128x64xf32, #tpu.memory_space<vmem>>, %arg8: memref<1x64xf32, #tpu.memory_space<vmem>>, %arg9: memref<64x1xf32, #tpu.memory_space<vmem>>, %arg10: memref<1x1xf32, #tpu.memory_space<vmem>>, %arg11: memref<8x1xf32, #tpu.memory_space<vmem>>) attributes {dimension_semantics = [#tpu.dimension_semantics<arbitrary>], iteration_bounds = array<i64: 1>, scalar_prefetch = 0 : i64, scratch_operands = 0 : i64, tpu.core_type = #tpu.core_type<tc>, window_params = [{pipeline_mode = #tpu.pipeline_mode<synchronous>, transform_indices = @transform_0, window_bounds = array<i64: 64, 1>}, {pipeline_mode = #tpu.pipeline_mode<synchronous>, transform_indices = @transform_1, window_bounds = array<i64: 8, 1>}, {pipeline_mode = #tpu.pipeline_mode<synchronous>, transform_indices = @transform_2, window_bounds = array<i64: 56, 128>}, {pipeline_mode = #tpu.pipeline_mode<synchronous>, transform_indices = @transform_3, window_bounds = array<i64: 32, 128>}, {pipeline_mode = #tpu.pipeline_mode<synchronous>, transform_indices = @transform_4, window_bounds = array<i64: 32, 128>}, {pipeline_mode = #tpu.pipeline_mode<synchronous>, transform_indices = @transform_5, window_bounds = array<i64: 1, 128>}, {pipeline_mode = #tpu.pipeline_mode<synchronous>, transform_indices = @transform_6, window_bounds = array<i64: 128, 64>}, {pipeline_mode = #tpu.pipeline_mode<synchronous>, transform_indices = @transform_7, window_bounds = array<i64: 1, 64>}, {pipeline_mode = #tpu.pipeline_mode<synchronous>, transform_indices = @transform_8, window_bounds = array<i64: 64, 1>}, {pipeline_mode = #tpu.pipeline_mode<synchronous>, transform_indices = @transform_9, window_bounds = array<i64: 1, 1>}, {pipeline_mode = #tpu.pipeline_mode<synchronous>, transform_indices = @transform_10, window_bounds = array<i64: 8, 1>}]} {
    %c0 = arith.constant 0 : index
    %c0_0 = arith.constant 0 : index
    %0 = vector.load %arg1[%c0, %c0_0] : memref<64x1xi32, #tpu.memory_space<vmem>>, vector<64x1xi32>
    %c0_1 = arith.constant 0 : index
    %c0_2 = arith.constant 0 : index
    %1 = vector.load %arg2[%c0_1, %c0_2] : memref<8x1xi32, #tpu.memory_space<vmem>>, vector<8x1xi32>
    %c0_3 = arith.constant 0 : index
    %c0_4 = arith.constant 0 : index
    %2 = vector.load %arg4[%c0_3, %c0_4] : memref<32x128xf32, #tpu.memory_space<vmem>>, vector<32x128xf32>
    %3 = tpu.iota {dimensions = array<i32: 1>} : vector<64x56xi32>
    %4 = vector.broadcast %0 : vector<64x1xi32> to vector<64x56xi32>
    %5 = arith.cmpi eq, %4, %3 : vector<64x56xi32>
    %6 = arith.extui %5 : vector<64x56xi1> to vector<64x56xi32>
    %7 = arith.sitofp %6 : vector<64x56xi32> to vector<64x56xf32>
    %c0_5 = arith.constant 0 : index
    %c0_6 = arith.constant 0 : index
    %8 = vector.load %arg3[%c0_5, %c0_6] : memref<56x128xf32, #tpu.memory_space<vmem>>, vector<56x128xf32>
    %cst = arith.constant dense<0.000000e+00> : vector<64x128xf32>
    %9 = tpu.matmul %7, %8, %cst {dimension_numbers = #tpu.dot_dimension_numbers<[1], [0], [0], [1], [0, 0, 1, 1], [], []>} : vector<64x56xf32>, vector<56x128xf32>, vector<64x128xf32> -> vector<64x128xf32>
    %cst_7 = arith.constant 0.000000e+00 : f32
    %10 = vector.broadcast %cst_7 : f32 to vector<8x32xf32>
    %cst_8 = arith.constant 0.000000e+00 : f32
    %11 = vector.broadcast %cst_8 : f32 to vector<8x32xf32>
    %12 = vector.extract_strided_slice %9 {offsets = [0, 0], sizes = [8, 128], strides = [1, 1]} : vector<64x128xf32> to vector<8x128xf32>
    %cst_9 = arith.constant dense<0.000000e+00> : vector<8x128xf32>
    %13 = tpu.matmul %10, %2, %cst_9 {dimension_numbers = #tpu.dot_dimension_numbers<[1], [0], [0], [1], [0, 0, 1, 1], [], []>} : vector<8x32xf32>, vector<32x128xf32>, vector<8x128xf32> -> vector<8x128xf32>
    %14 = arith.addf %12, %13 : vector<8x128xf32>
    %15 = vector.extract_strided_slice %14 {offsets = [0, 0], sizes = [8, 96], strides = [1, 1]} : vector<8x128xf32> to vector<8x96xf32>
    %16 = arith.negf %15 : vector<8x96xf32>
    %17 = math.exp %16 : vector<8x96xf32>
    %cst_10 = arith.constant 1.000000e+00 : f32
    %18 = vector.broadcast %cst_10 : f32 to vector<8x96xf32>
    %19 = arith.addf %18, %17 : vector<8x96xf32>
    %20 = arith.divf %18, %19 : vector<8x96xf32>
    %21 = vector.extract_strided_slice %14 {offsets = [0, 96], sizes = [8, 32], strides = [1, 1]} : vector<8x128xf32> to vector<8x32xf32>
    %22 = math.tanh %21 : vector<8x32xf32>
    %23 = vector.extract_strided_slice %20 {offsets = [0, 0], sizes = [8, 32], strides = [1, 1]} : vector<8x96xf32> to vector<8x32xf32>
    %24 = vector.extract_strided_slice %20 {offsets = [0, 32], sizes = [8, 32], strides = [1, 1]} : vector<8x96xf32> to vector<8x32xf32>
    %25 = vector.extract_strided_slice %20 {offsets = [0, 64], sizes = [8, 32], strides = [1, 1]} : vector<8x96xf32> to vector<8x32xf32>
    %26 = arith.mulf %24, %11 : vector<8x32xf32>
    %27 = arith.mulf %23, %22 : vector<8x32xf32>
    %28 = arith.addf %26, %27 : vector<8x32xf32>
    %29 = math.tanh %28 : vector<8x32xf32>
    %30 = arith.mulf %25, %29 : vector<8x32xf32>
    %c0_i32 = arith.constant 0 : i32
    %31 = vector.broadcast %c0_i32 : i32 to vector<8x1xi32>
    %32 = arith.cmpi sgt, %1, %31 : vector<8x1xi32>
    %33 = vector.shape_cast %32 : vector<8x1xi1> to vector<8x1xi1>
    %34 = vector.broadcast %33 : vector<8x1xi1> to vector<8x32xi1>
    %35 = arith.select %34, %30, %10 : vector<8x32xi1>, vector<8x32xf32>
    %36 = vector.shape_cast %32 : vector<8x1xi1> to vector<8x1xi1>
    %37 = vector.broadcast %36 : vector<8x1xi1> to vector<8x32xi1>
    %38 = arith.select %37, %28, %11 : vector<8x32xi1>, vector<8x32xf32>
    %39 = vector.extract_strided_slice %9 {offsets = [8, 0], sizes = [8, 128], strides = [1, 1]} : vector<64x128xf32> to vector<8x128xf32>
    %cst_11 = arith.constant dense<0.000000e+00> : vector<8x128xf32>
    %40 = tpu.matmul %35, %2, %cst_11 {dimension_numbers = #tpu.dot_dimension_numbers<[1], [0], [0], [1], [0, 0, 1, 1], [], []>} : vector<8x32xf32>, vector<32x128xf32>, vector<8x128xf32> -> vector<8x128xf32>
    %41 = arith.addf %39, %40 : vector<8x128xf32>
    %42 = vector.extract_strided_slice %41 {offsets = [0, 0], sizes = [8, 96], strides = [1, 1]} : vector<8x128xf32> to vector<8x96xf32>
    %43 = arith.negf %42 : vector<8x96xf32>
    %44 = math.exp %43 : vector<8x96xf32>
    %cst_12 = arith.constant 1.000000e+00 : f32
    %45 = vector.broadcast %cst_12 : f32 to vector<8x96xf32>
    %46 = arith.addf %45, %44 : vector<8x96xf32>
    %47 = arith.divf %45, %46 : vector<8x96xf32>
    %48 = vector.extract_strided_slice %41 {offsets = [0, 96], sizes = [8, 32], strides = [1, 1]} : vector<8x128xf32> to vector<8x32xf32>
    %49 = math.tanh %48 : vector<8x32xf32>
    %50 = vector.extract_strided_slice %47 {offsets = [0, 0], sizes = [8, 32], strides = [1, 1]} : vector<8x96xf32> to vector<8x32xf32>
    %51 = vector.extract_strided_slice %47 {offsets = [0, 32], sizes = [8, 32], strides = [1, 1]} : vector<8x96xf32> to vector<8x32xf32>
    %52 = vector.extract_strided_slice %47 {offsets = [0, 64], sizes = [8, 32], strides = [1, 1]} : vector<8x96xf32> to vector<8x32xf32>
    %53 = arith.mulf %51, %38 : vector<8x32xf32>
    %54 = arith.mulf %50, %49 : vector<8x32xf32>
    %55 = arith.addf %53, %54 : vector<8x32xf32>
    %56 = math.tanh %55 : vector<8x32xf32>
    %57 = arith.mulf %52, %56 : vector<8x32xf32>
    %c1_i32 = arith.constant 1 : i32
    %58 = vector.broadcast %c1_i32 : i32 to vector<8x1xi32>
    %59 = arith.cmpi sgt, %1, %58 : vector<8x1xi32>
    %60 = vector.shape_cast %59 : vector<8x1xi1> to vector<8x1xi1>
    %61 = vector.broadcast %60 : vector<8x1xi1> to vector<8x32xi1>
    %62 = arith.select %61, %57, %35 : vector<8x32xi1>, vector<8x32xf32>
    %63 = vector.shape_cast %59 : vector<8x1xi1> to vector<8x1xi1>
    %64 = vector.broadcast %63 : vector<8x1xi1> to vector<8x32xi1>
    %65 = arith.select %64, %55, %38 : vector<8x32xi1>, vector<8x32xf32>
    %66 = vector.extract_strided_slice %9 {offsets = [16, 0], sizes = [8, 128], strides = [1, 1]} : vector<64x128xf32> to vector<8x128xf32>
    %cst_13 = arith.constant dense<0.000000e+00> : vector<8x128xf32>
    %67 = tpu.matmul %62, %2, %cst_13 {dimension_numbers = #tpu.dot_dimension_numbers<[1], [0], [0], [1], [0, 0, 1, 1], [], []>} : vector<8x32xf32>, vector<32x128xf32>, vector<8x128xf32> -> vector<8x128xf32>
    %68 = arith.addf %66, %67 : vector<8x128xf32>
    %69 = vector.extract_strided_slice %68 {offsets = [0, 0], sizes = [8, 96], strides = [1, 1]} : vector<8x128xf32> to vector<8x96xf32>
    %70 = arith.negf %69 : vector<8x96xf32>
    %71 = math.exp %70 : vector<8x96xf32>
    %cst_14 = arith.constant 1.000000e+00 : f32
    %72 = vector.broadcast %cst_14 : f32 to vector<8x96xf32>
    %73 = arith.addf %72, %71 : vector<8x96xf32>
    %74 = arith.divf %72, %73 : vector<8x96xf32>
    %75 = vector.extract_strided_slice %68 {offsets = [0, 96], sizes = [8, 32], strides = [1, 1]} : vector<8x128xf32> to vector<8x32xf32>
    %76 = math.tanh %75 : vector<8x32xf32>
    %77 = vector.extract_strided_slice %74 {offsets = [0, 0], sizes = [8, 32], strides = [1, 1]} : vector<8x96xf32> to vector<8x32xf32>
    %78 = vector.extract_strided_slice %74 {offsets = [0, 32], sizes = [8, 32], strides = [1, 1]} : vector<8x96xf32> to vector<8x32xf32>
    %79 = vector.extract_strided_slice %74 {offsets = [0, 64], sizes = [8, 32], strides = [1, 1]} : vector<8x96xf32> to vector<8x32xf32>
    %80 = arith.mulf %78, %65 : vector<8x32xf32>
    %81 = arith.mulf %77, %76 : vector<8x32xf32>
    %82 = arith.addf %80, %81 : vector<8x32xf32>
    %83 = math.tanh %82 : vector<8x32xf32>
    %84 = arith.mulf %79, %83 : vector<8x32xf32>
    %c2_i32 = arith.constant 2 : i32
    %85 = vector.broadcast %c2_i32 : i32 to vector<8x1xi32>
    %86 = arith.cmpi sgt, %1, %85 : vector<8x1xi32>
    %87 = vector.shape_cast %86 : vector<8x1xi1> to vector<8x1xi1>
    %88 = vector.broadcast %87 : vector<8x1xi1> to vector<8x32xi1>
    %89 = arith.select %88, %84, %62 : vector<8x32xi1>, vector<8x32xf32>
    %90 = vector.shape_cast %86 : vector<8x1xi1> to vector<8x1xi1>
    %91 = vector.broadcast %90 : vector<8x1xi1> to vector<8x32xi1>
    %92 = arith.select %91, %82, %65 : vector<8x32xi1>, vector<8x32xf32>
    %93 = vector.extract_strided_slice %9 {offsets = [24, 0], sizes = [8, 128], strides = [1, 1]} : vector<64x128xf32> to vector<8x128xf32>
    %cst_15 = arith.constant dense<0.000000e+00> : vector<8x128xf32>
    %94 = tpu.matmul %89, %2, %cst_15 {dimension_numbers = #tpu.dot_dimension_numbers<[1], [0], [0], [1], [0, 0, 1, 1], [], []>} : vector<8x32xf32>, vector<32x128xf32>, vector<8x128xf32> -> vector<8x128xf32>
    %95 = arith.addf %93, %94 : vector<8x128xf32>
    %96 = vector.extract_strided_slice %95 {offsets = [0, 0], sizes = [8, 96], strides = [1, 1]} : vector<8x128xf32> to vector<8x96xf32>
    %97 = arith.negf %96 : vector<8x96xf32>
    %98 = math.exp %97 : vector<8x96xf32>
    %cst_16 = arith.constant 1.000000e+00 : f32
    %99 = vector.broadcast %cst_16 : f32 to vector<8x96xf32>
    %100 = arith.addf %99, %98 : vector<8x96xf32>
    %101 = arith.divf %99, %100 : vector<8x96xf32>
    %102 = vector.extract_strided_slice %95 {offsets = [0, 96], sizes = [8, 32], strides = [1, 1]} : vector<8x128xf32> to vector<8x32xf32>
    %103 = math.tanh %102 : vector<8x32xf32>
    %104 = vector.extract_strided_slice %101 {offsets = [0, 0], sizes = [8, 32], strides = [1, 1]} : vector<8x96xf32> to vector<8x32xf32>
    %105 = vector.extract_strided_slice %101 {offsets = [0, 32], sizes = [8, 32], strides = [1, 1]} : vector<8x96xf32> to vector<8x32xf32>
    %106 = vector.extract_strided_slice %101 {offsets = [0, 64], sizes = [8, 32], strides = [1, 1]} : vector<8x96xf32> to vector<8x32xf32>
    %107 = arith.mulf %105, %92 : vector<8x32xf32>
    %108 = arith.mulf %104, %103 : vector<8x32xf32>
    %109 = arith.addf %107, %108 : vector<8x32xf32>
    %110 = math.tanh %109 : vector<8x32xf32>
    %111 = arith.mulf %106, %110 : vector<8x32xf32>
    %c3_i32 = arith.constant 3 : i32
    %112 = vector.broadcast %c3_i32 : i32 to vector<8x1xi32>
    %113 = arith.cmpi sgt, %1, %112 : vector<8x1xi32>
    %114 = vector.shape_cast %113 : vector<8x1xi1> to vector<8x1xi1>
    %115 = vector.broadcast %114 : vector<8x1xi1> to vector<8x32xi1>
    %116 = arith.select %115, %111, %89 : vector<8x32xi1>, vector<8x32xf32>
    %117 = vector.shape_cast %113 : vector<8x1xi1> to vector<8x1xi1>
    %118 = vector.broadcast %117 : vector<8x1xi1> to vector<8x32xi1>
    %119 = arith.select %118, %109, %92 : vector<8x32xi1>, vector<8x32xf32>
    %120 = vector.extract_strided_slice %9 {offsets = [32, 0], sizes = [8, 128], strides = [1, 1]} : vector<64x128xf32> to vector<8x128xf32>
    %cst_17 = arith.constant dense<0.000000e+00> : vector<8x128xf32>
    %121 = tpu.matmul %116, %2, %cst_17 {dimension_numbers = #tpu.dot_dimension_numbers<[1], [0], [0], [1], [0, 0, 1, 1], [], []>} : vector<8x32xf32>, vector<32x128xf32>, vector<8x128xf32> -> vector<8x128xf32>
    %122 = arith.addf %120, %121 : vector<8x128xf32>
    %123 = vector.extract_strided_slice %122 {offsets = [0, 0], sizes = [8, 96], strides = [1, 1]} : vector<8x128xf32> to vector<8x96xf32>
    %124 = arith.negf %123 : vector<8x96xf32>
    %125 = math.exp %124 : vector<8x96xf32>
    %cst_18 = arith.constant 1.000000e+00 : f32
    %126 = vector.broadcast %cst_18 : f32 to vector<8x96xf32>
    %127 = arith.addf %126, %125 : vector<8x96xf32>
    %128 = arith.divf %126, %127 : vector<8x96xf32>
    %129 = vector.extract_strided_slice %122 {offsets = [0, 96], sizes = [8, 32], strides = [1, 1]} : vector<8x128xf32> to vector<8x32xf32>
    %130 = math.tanh %129 : vector<8x32xf32>
    %131 = vector.extract_strided_slice %128 {offsets = [0, 0], sizes = [8, 32], strides = [1, 1]} : vector<8x96xf32> to vector<8x32xf32>
    %132 = vector.extract_strided_slice %128 {offsets = [0, 32], sizes = [8, 32], strides = [1, 1]} : vector<8x96xf32> to vector<8x32xf32>
    %133 = vector.extract_strided_slice %128 {offsets = [0, 64], sizes = [8, 32], strides = [1, 1]} : vector<8x96xf32> to vector<8x32xf32>
    %134 = arith.mulf %132, %119 : vector<8x32xf32>
    %135 = arith.mulf %131, %130 : vector<8x32xf32>
    %136 = arith.addf %134, %135 : vector<8x32xf32>
    %137 = math.tanh %136 : vector<8x32xf32>
    %138 = arith.mulf %133, %137 : vector<8x32xf32>
    %c4_i32 = arith.constant 4 : i32
    %139 = vector.broadcast %c4_i32 : i32 to vector<8x1xi32>
    %140 = arith.cmpi sgt, %1, %139 : vector<8x1xi32>
    %141 = vector.shape_cast %140 : vector<8x1xi1> to vector<8x1xi1>
    %142 = vector.broadcast %141 : vector<8x1xi1> to vector<8x32xi1>
    %143 = arith.select %142, %138, %116 : vector<8x32xi1>, vector<8x32xf32>
    %144 = vector.shape_cast %140 : vector<8x1xi1> to vector<8x1xi1>
    %145 = vector.broadcast %144 : vector<8x1xi1> to vector<8x32xi1>
    %146 = arith.select %145, %136, %119 : vector<8x32xi1>, vector<8x32xf32>
    %147 = vector.extract_strided_slice %9 {offsets = [40, 0], sizes = [8, 128], strides = [1, 1]} : vector<64x128xf32> to vector<8x128xf32>
    %cst_19 = arith.constant dense<0.000000e+00> : vector<8x128xf32>
    %148 = tpu.matmul %143, %2, %cst_19 {dimension_numbers = #tpu.dot_dimension_numbers<[1], [0], [0], [1], [0, 0, 1, 1], [], []>} : vector<8x32xf32>, vector<32x128xf32>, vector<8x128xf32> -> vector<8x128xf32>
    %149 = arith.addf %147, %148 : vector<8x128xf32>
    %150 = vector.extract_strided_slice %149 {offsets = [0, 0], sizes = [8, 96], strides = [1, 1]} : vector<8x128xf32> to vector<8x96xf32>
    %151 = arith.negf %150 : vector<8x96xf32>
    %152 = math.exp %151 : vector<8x96xf32>
    %cst_20 = arith.constant 1.000000e+00 : f32
    %153 = vector.broadcast %cst_20 : f32 to vector<8x96xf32>
    %154 = arith.addf %153, %152 : vector<8x96xf32>
    %155 = arith.divf %153, %154 : vector<8x96xf32>
    %156 = vector.extract_strided_slice %149 {offsets = [0, 96], sizes = [8, 32], strides = [1, 1]} : vector<8x128xf32> to vector<8x32xf32>
    %157 = math.tanh %156 : vector<8x32xf32>
    %158 = vector.extract_strided_slice %155 {offsets = [0, 0], sizes = [8, 32], strides = [1, 1]} : vector<8x96xf32> to vector<8x32xf32>
    %159 = vector.extract_strided_slice %155 {offsets = [0, 32], sizes = [8, 32], strides = [1, 1]} : vector<8x96xf32> to vector<8x32xf32>
    %160 = vector.extract_strided_slice %155 {offsets = [0, 64], sizes = [8, 32], strides = [1, 1]} : vector<8x96xf32> to vector<8x32xf32>
    %161 = arith.mulf %159, %146 : vector<8x32xf32>
    %162 = arith.mulf %158, %157 : vector<8x32xf32>
    %163 = arith.addf %161, %162 : vector<8x32xf32>
    %164 = math.tanh %163 : vector<8x32xf32>
    %165 = arith.mulf %160, %164 : vector<8x32xf32>
    %c5_i32 = arith.constant 5 : i32
    %166 = vector.broadcast %c5_i32 : i32 to vector<8x1xi32>
    %167 = arith.cmpi sgt, %1, %166 : vector<8x1xi32>
    %168 = vector.shape_cast %167 : vector<8x1xi1> to vector<8x1xi1>
    %169 = vector.broadcast %168 : vector<8x1xi1> to vector<8x32xi1>
    %170 = arith.select %169, %165, %143 : vector<8x32xi1>, vector<8x32xf32>
    %171 = vector.shape_cast %167 : vector<8x1xi1> to vector<8x1xi1>
    %172 = vector.broadcast %171 : vector<8x1xi1> to vector<8x32xi1>
    %173 = arith.select %172, %163, %146 : vector<8x32xi1>, vector<8x32xf32>
    %174 = vector.extract_strided_slice %9 {offsets = [48, 0], sizes = [8, 128], strides = [1, 1]} : vector<64x128xf32> to vector<8x128xf32>
    %cst_21 = arith.constant dense<0.000000e+00> : vector<8x128xf32>
    %175 = tpu.matmul %170, %2, %cst_21 {dimension_numbers = #tpu.dot_dimension_numbers<[1], [0], [0], [1], [0, 0, 1, 1], [], []>} : vector<8x32xf32>, vector<32x128xf32>, vector<8x128xf32> -> vector<8x128xf32>
    %176 = arith.addf %174, %175 : vector<8x128xf32>
    %177 = vector.extract_strided_slice %176 {offsets = [0, 0], sizes = [8, 96], strides = [1, 1]} : vector<8x128xf32> to vector<8x96xf32>
    %178 = arith.negf %177 : vector<8x96xf32>
    %179 = math.exp %178 : vector<8x96xf32>
    %cst_22 = arith.constant 1.000000e+00 : f32
    %180 = vector.broadcast %cst_22 : f32 to vector<8x96xf32>
    %181 = arith.addf %180, %179 : vector<8x96xf32>
    %182 = arith.divf %180, %181 : vector<8x96xf32>
    %183 = vector.extract_strided_slice %176 {offsets = [0, 96], sizes = [8, 32], strides = [1, 1]} : vector<8x128xf32> to vector<8x32xf32>
    %184 = math.tanh %183 : vector<8x32xf32>
    %185 = vector.extract_strided_slice %182 {offsets = [0, 0], sizes = [8, 32], strides = [1, 1]} : vector<8x96xf32> to vector<8x32xf32>
    %186 = vector.extract_strided_slice %182 {offsets = [0, 32], sizes = [8, 32], strides = [1, 1]} : vector<8x96xf32> to vector<8x32xf32>
    %187 = vector.extract_strided_slice %182 {offsets = [0, 64], sizes = [8, 32], strides = [1, 1]} : vector<8x96xf32> to vector<8x32xf32>
    %188 = arith.mulf %186, %173 : vector<8x32xf32>
    %189 = arith.mulf %185, %184 : vector<8x32xf32>
    %190 = arith.addf %188, %189 : vector<8x32xf32>
    %191 = math.tanh %190 : vector<8x32xf32>
    %192 = arith.mulf %187, %191 : vector<8x32xf32>
    %c6_i32 = arith.constant 6 : i32
    %193 = vector.broadcast %c6_i32 : i32 to vector<8x1xi32>
    %194 = arith.cmpi sgt, %1, %193 : vector<8x1xi32>
    %195 = vector.shape_cast %194 : vector<8x1xi1> to vector<8x1xi1>
    %196 = vector.broadcast %195 : vector<8x1xi1> to vector<8x32xi1>
    %197 = arith.select %196, %192, %170 : vector<8x32xi1>, vector<8x32xf32>
    %198 = vector.shape_cast %194 : vector<8x1xi1> to vector<8x1xi1>
    %199 = vector.broadcast %198 : vector<8x1xi1> to vector<8x32xi1>
    %200 = arith.select %199, %190, %173 : vector<8x32xi1>, vector<8x32xf32>
    %201 = vector.extract_strided_slice %9 {offsets = [56, 0], sizes = [8, 128], strides = [1, 1]} : vector<64x128xf32> to vector<8x128xf32>
    %cst_23 = arith.constant dense<0.000000e+00> : vector<8x128xf32>
    %202 = tpu.matmul %197, %2, %cst_23 {dimension_numbers = #tpu.dot_dimension_numbers<[1], [0], [0], [1], [0, 0, 1, 1], [], []>} : vector<8x32xf32>, vector<32x128xf32>, vector<8x128xf32> -> vector<8x128xf32>
    %203 = arith.addf %201, %202 : vector<8x128xf32>
    %204 = vector.extract_strided_slice %203 {offsets = [0, 0], sizes = [8, 96], strides = [1, 1]} : vector<8x128xf32> to vector<8x96xf32>
    %205 = arith.negf %204 : vector<8x96xf32>
    %206 = math.exp %205 : vector<8x96xf32>
    %cst_24 = arith.constant 1.000000e+00 : f32
    %207 = vector.broadcast %cst_24 : f32 to vector<8x96xf32>
    %208 = arith.addf %207, %206 : vector<8x96xf32>
    %209 = arith.divf %207, %208 : vector<8x96xf32>
    %210 = vector.extract_strided_slice %203 {offsets = [0, 96], sizes = [8, 32], strides = [1, 1]} : vector<8x128xf32> to vector<8x32xf32>
    %211 = math.tanh %210 : vector<8x32xf32>
    %212 = vector.extract_strided_slice %209 {offsets = [0, 0], sizes = [8, 32], strides = [1, 1]} : vector<8x96xf32> to vector<8x32xf32>
    %213 = vector.extract_strided_slice %209 {offsets = [0, 32], sizes = [8, 32], strides = [1, 1]} : vector<8x96xf32> to vector<8x32xf32>
    %214 = vector.extract_strided_slice %209 {offsets = [0, 64], sizes = [8, 32], strides = [1, 1]} : vector<8x96xf32> to vector<8x32xf32>
    %215 = arith.mulf %213, %200 : vector<8x32xf32>
    %216 = arith.mulf %212, %211 : vector<8x32xf32>
    %217 = arith.addf %215, %216 : vector<8x32xf32>
    %218 = math.tanh %217 : vector<8x32xf32>
    %219 = arith.mulf %214, %218 : vector<8x32xf32>
    %c7_i32 = arith.constant 7 : i32
    %220 = vector.broadcast %c7_i32 : i32 to vector<8x1xi32>
    %221 = arith.cmpi sgt, %1, %220 : vector<8x1xi32>
    %222 = vector.shape_cast %221 : vector<8x1xi1> to vector<8x1xi1>
    %223 = vector.broadcast %222 : vector<8x1xi1> to vector<8x32xi1>
    %224 = arith.select %223, %219, %197 : vector<8x32xi1>, vector<8x32xf32>
    %c0_25 = arith.constant 0 : index
    %c0_26 = arith.constant 0 : index
    %225 = vector.load %arg5[%c0_25, %c0_26] : memref<32x128xf32, #tpu.memory_space<vmem>>, vector<32x128xf32>
    %cst_27 = arith.constant dense<0.000000e+00> : vector<8x128xf32>
    %226 = tpu.matmul %224, %225, %cst_27 {dimension_numbers = #tpu.dot_dimension_numbers<[1], [0], [0], [1], [0, 0, 1, 1], [], []>} : vector<8x32xf32>, vector<32x128xf32>, vector<8x128xf32> -> vector<8x128xf32>
    %c0_28 = arith.constant 0 : index
    %c0_29 = arith.constant 0 : index
    %227 = vector.load %arg6[%c0_28, %c0_29] : memref<1x128xf32, #tpu.memory_space<vmem>>, vector<1x128xf32>
    %228 = vector.broadcast %227 : vector<1x128xf32> to vector<8x128xf32>
    %229 = arith.addf %226, %228 : vector<8x128xf32>
    %cst_30 = arith.constant 0.000000e+00 : f32
    %230 = vector.broadcast %cst_30 : f32 to vector<8x128xf32>
    %231 = arith.maximumf %229, %230 : vector<8x128xf32>
    %c0_31 = arith.constant 0 : index
    %c0_32 = arith.constant 0 : index
    %232 = vector.load %arg7[%c0_31, %c0_32] : memref<128x64xf32, #tpu.memory_space<vmem>>, vector<128x64xf32>
    %cst_33 = arith.constant dense<0.000000e+00> : vector<8x64xf32>
    %233 = tpu.matmul %231, %232, %cst_33 {dimension_numbers = #tpu.dot_dimension_numbers<[1], [0], [0], [1], [0, 0, 1, 1], [], []>} : vector<8x128xf32>, vector<128x64xf32>, vector<8x64xf32> -> vector<8x64xf32>
    %c0_34 = arith.constant 0 : index
    %c0_35 = arith.constant 0 : index
    %234 = vector.load %arg8[%c0_34, %c0_35] : memref<1x64xf32, #tpu.memory_space<vmem>>, vector<1x64xf32>
    %235 = vector.broadcast %234 : vector<1x64xf32> to vector<8x64xf32>
    %236 = arith.addf %233, %235 : vector<8x64xf32>
    %cst_36 = arith.constant 0.000000e+00 : f32
    %237 = vector.broadcast %cst_36 : f32 to vector<8x64xf32>
    %238 = arith.maximumf %236, %237 : vector<8x64xf32>
    %c0_37 = arith.constant 0 : index
    %c0_38 = arith.constant 0 : index
    %239 = vector.load %arg9[%c0_37, %c0_38] : memref<64x1xf32, #tpu.memory_space<vmem>>, vector<64x1xf32>
    %cst_39 = arith.constant dense<0.000000e+00> : vector<8x1xf32>
    %240 = tpu.matmul %238, %239, %cst_39 {dimension_numbers = #tpu.dot_dimension_numbers<[1], [0], [0], [1], [0, 0, 1, 1], [], []>} : vector<8x64xf32>, vector<64x1xf32>, vector<8x1xf32> -> vector<8x1xf32>
    %c0_40 = arith.constant 0 : index
    %c0_41 = arith.constant 0 : index
    %241 = vector.load %arg10[%c0_40, %c0_41] : memref<1x1xf32, #tpu.memory_space<vmem>>, vector<1x1xf32>
    %242 = vector.broadcast %241 : vector<1x1xf32> to vector<8x1xf32>
    %243 = arith.addf %240, %242 : vector<8x1xf32>
    %244 = arith.negf %243 : vector<8x1xf32>
    %245 = math.exp %244 : vector<8x1xf32>
    %cst_42 = arith.constant 1.000000e+00 : f32
    %246 = vector.broadcast %cst_42 : f32 to vector<8x1xf32>
    %247 = arith.addf %246, %245 : vector<8x1xf32>
    %248 = arith.divf %246, %247 : vector<8x1xf32>
    %c0_43 = arith.constant 0 : index
    %c0_44 = arith.constant 0 : index
    %249 = vector.load %arg11[%c0_43, %c0_44] : memref<8x1xf32, #tpu.memory_space<vmem>>, vector<8x1xf32>
    tpu.vector_store %arg11[%c0_43, %c0_44], %248 {strides = array<i32>} : memref<8x1xf32, #tpu.memory_space<vmem>>, vector<8x1xf32>,
    return
  }
  func.func @transform_0(%arg0: i32) -> (i32, i32) {
    %c0_i32 = arith.constant 0 : i32
    %c0_i32_0 = arith.constant 0 : i32
    %c0_i32_1 = arith.constant 0 : i32
    return %c0_i32, %c0_i32_0 : i32, i32
  }
  func.func @transform_1(%arg0: i32) -> (i32, i32) {
    %c0_i32 = arith.constant 0 : i32
    %c0_i32_0 = arith.constant 0 : i32
    %c0_i32_1 = arith.constant 0 : i32
    return %c0_i32, %c0_i32_0 : i32, i32
  }
  func.func @transform_2(%arg0: i32) -> (i32, i32) {
    %c0_i32 = arith.constant 0 : i32
    %c0_i32_0 = arith.constant 0 : i32
    %c0_i32_1 = arith.constant 0 : i32
    return %c0_i32, %c0_i32_0 : i32, i32
  }
  func.func @transform_3(%arg0: i32) -> (i32, i32) {
    %c0_i32 = arith.constant 0 : i32
    %c0_i32_0 = arith.constant 0 : i32
    %c0_i32_1 = arith.constant 0 : i32
    return %c0_i32, %c0_i32_0 : i32, i32
  }
  func.func @transform_4(%arg0: i32) -> (i32, i32) {
    %c0_i32 = arith.constant 0 : i32
    %c0_i32_0 = arith.constant 0 : i32
    %c0_i32_1 = arith.constant 0 : i32
    return %c0_i32, %c0_i32_0 : i32, i32
  }
  func.func @transform_5(%arg0: i32) -> (i32, i32) {
    %c0_i32 = arith.constant 0 : i32
    %c0_i32_0 = arith.constant 0 : i32
    %c0_i32_1 = arith.constant 0 : i32
    return %c0_i32, %c0_i32_0 : i32, i32
  }
  func.func @transform_6(%arg0: i32) -> (i32, i32) {
    %c0_i32 = arith.constant 0 : i32
    %c0_i32_0 = arith.constant 0 : i32
    %c0_i32_1 = arith.constant 0 : i32
    return %c0_i32, %c0_i32_0 : i32, i32
  }
  func.func @transform_7(%arg0: i32) -> (i32, i32) {
    %c0_i32 = arith.constant 0 : i32
    %c0_i32_0 = arith.constant 0 : i32
    %c0_i32_1 = arith.constant 0 : i32
    return %c0_i32, %c0_i32_0 : i32, i32
  }
  func.func @transform_8(%arg0: i32) -> (i32, i32) {
    %c0_i32 = arith.constant 0 : i32
    %c0_i32_0 = arith.constant 0 : i32
    %c0_i32_1 = arith.constant 0 : i32
    return %c0_i32, %c0_i32_0 : i32, i32
  }
  func.func @transform_9(%arg0: i32) -> (i32, i32) {
    %c0_i32 = arith.constant 0 : i32
    %c0_i32_0 = arith.constant 0 : i32
    %c0_i32_1 = arith.constant 0 : i32
    return %c0_i32, %c0_i32_0 : i32, i32
  }
  func.func @transform_10(%arg0: i32) -> (i32, i32) {
    %c0_i32 = arith.constant 0 : i32
    %c0_i32_0 = arith.constant 0 : i32
    %c0_i32_1 = arith.constant 0 : i32
    return %c0_i32, %c0_i32_0 : i32, i32
  }
}

</mosaic_0001>

<llo_original>
// kernel: tpu_custom_call.1
$region0: #{tpu_custom_call.1}
  #allocation0 [shape = 'u32[]', space=smem, size = 0x4, offset = 0x4, fixed_abs, tag = 'smem constant byte address 0x4 - core index']
  #allocation1 [shape = 'u32[144,128]{1,0:T(1,128)}', space=vmem, size = 0x12000, scoped, tag = 'internal scratch']
  #allocation2 [shape = 'f32[1,1]{1,0:T(1,128)S(1)}', space=vmem, size = 0x200, scoped, tag = 'scoped memory for tpu_custom_call.1']
  %s0 = inlined_call_operand.vmem [shape: s32[64,1], index: 0, kind: input, shape index: {}]
  %s1 = inlined_call_operand.vmem [shape: s32[8,1], index: 1, kind: input, shape index: {}]
  %s2 = inlined_call_operand.vmem [shape: f32[56,128], index: 2, kind: input, shape index: {}]
  %s3 = inlined_call_operand.vmem [shape: f32[32,128], index: 3, kind: input, shape index: {}]
  %s4 = inlined_call_operand.vmem [shape: f32[32,128], index: 4, kind: input, shape index: {}]
  %s5 = inlined_call_operand.vmem [shape: f32[1,128], index: 5, kind: input, shape index: {}]
  %s6 = inlined_call_operand.vmem [shape: f32[128,64], index: 6, kind: input, shape index: {}]
  %s7 = inlined_call_operand.vmem [shape: f32[1,64], index: 7, kind: input, shape index: {}]
  %s8 = inlined_call_operand.vmem [shape: f32[64,1], index: 8, kind: input, shape index: {}]
  %s9 = inlined_call_operand.<no memory space> [shape: f32[1,1], index: 9, kind: input, shape index: {}]
  %s10 = inlined_call_operand.vmem [shape: f32[8,1], index: 10, kind: output, shape index: {}]
  %s11 = sld [smem:[#allocation0]]
  $region50: #{tpu_custom_call.1} parent=0
    _
  %s13 = ssub.s32 1, %s11
  %s14 = scalar_select 0, %s13, %s11
  %v15 = vstv %s9
  %16 = vst [vmem:[#allocation2] sm:$0x1] %v15
  // Predicated region
  $region2: #{tpu_custom_call.1} parent=0 // pred_check
    _
  $region3: #{tpu_custom_call.1} parent=0 // pred_check_branch
    %18 = sbr.rel (0) target = $region5
  $region4: #{tpu_custom_call.1} parent=0 // pred_region
    _
  $region5: #{tpu_custom_call.1} parent=0 // pred_fallthru
    _
  // Predicated region
  $region6: #{tpu_custom_call.1} parent=0 // pred_check
    _
  $region7: #{tpu_custom_call.1} parent=0 // pred_check_branch
    %20 = sbr.rel (0) target = $region9
  $region8: #{tpu_custom_call.1} parent=0 // pred_region
    _
  $region9: #{tpu_custom_call.1} parent=0 // pred_fallthru
    _
  // Predicated region
  $region10: #{tpu_custom_call.1} parent=0 // pred_check
    _
  $region11: #{tpu_custom_call.1} parent=0 // pred_check_branch
    %22 = sbr.rel (0) target = $region13
  $region12: #{tpu_custom_call.1} parent=0 // pred_region
    _
  $region13: #{tpu_custom_call.1} parent=0 // pred_fallthru
    _
  // Predicated region
  $region14: #{tpu_custom_call.1} parent=0 // pred_check
    _
  $region15: #{tpu_custom_call.1} parent=0 // pred_check_branch
    %24 = sbr.rel (0) target = $region17
  $region16: #{tpu_custom_call.1} parent=0 // pred_region
    _
  $region17: #{tpu_custom_call.1} parent=0 // pred_fallthru
    _
  // Predicated region
  $region18: #{tpu_custom_call.1} parent=0 // pred_check
    _
  $region19: #{tpu_custom_call.1} parent=0 // pred_check_branch
    %26 = sbr.rel (0) target = $region21
  $region20: #{tpu_custom_call.1} parent=0 // pred_region
    _
  $region21: #{tpu_custom_call.1} parent=0 // pred_fallthru
    _
  // Predicated region
  $region22: #{tpu_custom_call.1} parent=0 // pred_check
    _
  $region23: #{tpu_custom_call.1} parent=0 // pred_check_branch
    %28 = sbr.rel (0) target = $region25
  $region24: #{tpu_custom_call.1} parent=0 // pred_region
    _
  $region25: #{tpu_custom_call.1} parent=0 // pred_fallthru
    _
  // Predicated region
  $region26: #{tpu_custom_call.1} parent=0 // pred_check
    _
  $region27: #{tpu_custom_call.1} parent=0 // pred_check_branch
    %30 = sbr.rel (0) target = $region29
  $region28: #{tpu_custom_call.1} parent=0 // pred_region
    _
  $region29: #{tpu_custom_call.1} parent=0 // pred_fallthru
    _
  // Predicated region
  $region30: #{tpu_custom_call.1} parent=0 // pred_check
    _
  $region31: #{tpu_custom_call.1} parent=0 // pred_check_branch
    %32 = sbr.rel (0) target = $region33
  $region32: #{tpu_custom_call.1} parent=0 // pred_region
    _
  $region33: #{tpu_custom_call.1} parent=0 // pred_fallthru
    _
  // Predicated region
  $region34: #{tpu_custom_call.1} parent=0 // pred_check
    _
  $region35: #{tpu_custom_call.1} parent=0 // pred_check_branch
    %34 = sbr.rel (0) target = $region37
  $region36: #{tpu_custom_call.1} parent=0 // pred_region
    _
  $region37: #{tpu_custom_call.1} parent=0 // pred_fallthru
    _
  // Predicated region
  $region38: #{tpu_custom_call.1} parent=0 // pred_check
    _
  $region39: #{tpu_custom_call.1} parent=0 // pred_check_branch
    %36 = sbr.rel (0) target = $region41
  $region40: #{tpu_custom_call.1} parent=0 // pred_region
    _
  $region41: #{tpu_custom_call.1} parent=0 // pred_fallthru
    _
  %v37 = vld [vmem:[%s0] sm:$0xff]
  %v38 = vld [vmem:[%s0 + $0x8] sm:$0xff]
  %v39 = vld [vmem:[%s0 + $0x10] sm:$0xff]
  %v40 = vld [vmem:[%s0 + $0x18] sm:$0xff]
  %v41 = vld [vmem:[%s0 + $0x20] sm:$0xff]
  %v42 = vld [vmem:[%s0 + $0x28] sm:$0xff]
  %v43 = vld [vmem:[%s0 + $0x30] sm:$0xff]
  %v44 = vld [vmem:[%s0 + $0x38] sm:$0xff]
  %v45 = vld [vmem:[%s1] sm:$0xff]
  %v46 = vld [vmem:[%s3] sm:$0xff]
  %v47 = vld [vmem:[%s3 + $0x8] sm:$0xff]
  %v48 = vld [vmem:[%s3 + $0x10] sm:$0xff]
  %v49 = vld [vmem:[%s3 + $0x18] sm:$0xff]
  %v50 = vlaneseq
  %v51 = vand.u32 %v50, 127
  %52 = vset.pattern.permute.xlu0 0
  %53 = vperm.xlu0 %52, %v37
  %v54 = vpop.permute.xlu0 %53
  %55 = vset.pattern.permute.xlu0 0
  %56 = vperm.xlu0 %55, %v38
  %v57 = vpop.permute.xlu0 %56
  %58 = vset.pattern.permute.xlu0 0
  %59 = vperm.xlu0 %58, %v39
  %v60 = vpop.permute.xlu0 %59
  %61 = vset.pattern.permute.xlu0 0
  %62 = vperm.xlu0 %61, %v40
  %v63 = vpop.permute.xlu0 %62
  %64 = vset.pattern.permute.xlu0 0
  %65 = vperm.xlu0 %64, %v41
  %v66 = vpop.permute.xlu0 %65
  %67 = vset.pattern.permute.xlu0 0
  %68 = vperm.xlu0 %67, %v42
  %v69 = vpop.permute.xlu0 %68
  %70 = vset.pattern.permute.xlu0 0
  %71 = vperm.xlu0 %70, %v43
  %v72 = vpop.permute.xlu0 %71
  %73 = vset.pattern.permute.xlu0 0
  %74 = vperm.xlu0 %73, %v44
  %v75 = vpop.permute.xlu0 %74
  %vm76 = vcmp.eq.s32.totalorder %v54, %v51
  %vm77 = vcmp.eq.s32.totalorder %v57, %v51
  %vm78 = vcmp.eq.s32.totalorder %v60, %v51
  %vm79 = vcmp.eq.s32.totalorder %v63, %v51
  %vm80 = vcmp.eq.s32.totalorder %v66, %v51
  %vm81 = vcmp.eq.s32.totalorder %v69, %v51
  %vm82 = vcmp.eq.s32.totalorder %v72, %v51
  %vm83 = vcmp.eq.s32.totalorder %v75, %v51
  %v84 = vsel %vm76, 1, 0
  %v85 = vsel %vm77, 1, 0
  %v86 = vsel %vm78, 1, 0
  %v87 = vsel %vm79, 1, 0
  %v88 = vsel %vm80, 1, 0
  %v89 = vsel %vm81, 1, 0
  %v90 = vsel %vm82, 1, 0
  %v91 = vsel %vm83, 1, 0
  %v92 = vcvt.s32.f32 %v84
  %v93 = vcvt.s32.f32 %v85
  %v94 = vcvt.s32.f32 %v86
  %v95 = vcvt.s32.f32 %v87
  %v96 = vcvt.s32.f32 %v88
  %v97 = vcvt.s32.f32 %v89
  %v98 = vcvt.s32.f32 %v90
  %v99 = vcvt.s32.f32 %v91
  %v100 = vld [vmem:[%s2] sm:$0xff]
  %v101 = vld [vmem:[%s2 + $0x8] sm:$0xff]
  %v102 = vld [vmem:[%s2 + $0x10] sm:$0xff]
  %v103 = vld [vmem:[%s2 + $0x18] sm:$0xff]
  %v104 = vld [vmem:[%s2 + $0x20] sm:$0xff]
  %v105 = vld [vmem:[%s2 + $0x28] sm:$0xff]
  %v106 = vld [vmem:[%s2 + $0x30] sm:$0xff]
  %vm107 = vcmask 457728
  %v109 = vsel %vm107, %v92, 0
  %v112 = vsel %vm107, %v93, 0
  %v115 = vsel %vm107, %v94, 0
  %v118 = vsel %vm107, %v95, 0
  %v121 = vsel %vm107, %v96, 0
  %v124 = vsel %vm107, %v97, 0
  %v127 = vsel %vm107, %v98, 0
  %v130 = vsel %vm107, %v99, 0
  %132 = vmatprep.subr.mxu0 0.0
  %133 = vmatpush1.msra.mxu0 %v100
  %134 = vmatprep.subr.mxu0 0.0
  %135 = vmatpush1.msra.mxu0 %v101
  %136 = vmatprep.subr.mxu0 0.0
  %137 = vmatpush1.msra.mxu0 %v102
  %138 = vmatprep.subr.mxu0 0.0
  %139 = vmatpush1.msra.mxu0 %v103
  %140 = vmatprep.subr.mxu0 0.0
  %141 = vmatpush1.msra.mxu0 %v104
  %142 = vmatprep.subr.mxu0 0.0
  %143 = vmatpush1.msra.mxu0 %v105
  %144 = vmatprep.subr.mxu0 0.0
  %145 = vmatpush1.msra.mxu0 %v106
  %146 = vmatprep.subr.mxu0 0.0
  %147 = vmatpush1.msra.mxu0 0.0
  %148 = vmatprep.subr.mxu0 0.0
  %149 = vmatpush1.msra.mxu0 0.0
  %150 = vmatprep.subr.mxu0 0.0
  %151 = vmatpush1.msra.mxu0 0.0
  %152 = vmatprep.subr.mxu0 0.0
  %153 = vmatpush1.msra.mxu0 0.0
  %154 = vmatprep.subr.mxu0 0.0
  %155 = vmatpush1.msra.mxu0 0.0
  %156 = vmatprep.subr.mxu0 0.0
  %157 = vmatpush1.msra.mxu0 0.0
  %158 = vmatprep.subr.mxu0 0.0
  %159 = vmatpush1.msra.mxu0 0.0
  %160 = vmatprep.subr.mxu0 0.0
  %161 = vmatpush1.msra.mxu0 0.0
  %162 = vmatprep.subr.mxu0 0.0
  %163 = vmatpush1.msra.mxu0 0.0
  %164 = vmatprep.subr.mxu0 0.0
  %165 = vmatpush1.msra.mxu0 0.0
  %166 = vmatprep.subr.mxu0 0.0
  %167 = vmatpush1.msra.mxu0 0.0
  %168 = vmatprep.subr.mxu0 0.0
  %169 = vmatpush1.msra.mxu0 0.0
  %170 = vmatprep.subr.mxu0 0.0
  %171 = vmatpush1.msra.mxu0 0.0
  %172 = vmatprep.subr.mxu0 0.0
  %173 = vmatpush1.msra.mxu0 0.0
  %174 = vmatprep.subr.mxu0 0.0
  %175 = vmatpush1.msra.mxu0 0.0
  %176 = vmatprep.subr.mxu0 0.0
  %177 = vmatpush1.msra.mxu0 0.0
  %178 = vmatprep.subr.mxu0 0.0
  %179 = vmatpush1.msra.mxu0 0.0
  %180 = vmatprep.subr.mxu0 0.0
  %181 = vmatpush1.msra.mxu0 0.0
  %182 = vmatprep.subr.mxu0 0.0
  %183 = vmatpush1.msra.mxu0 0.0
  %184 = vmatprep.subr.mxu0 0.0
  %185 = vmatpush1.msra.mxu0 0.0
  %186 = vmatprep.subr.mxu0 0.0
  %187 = vmatpush1.msra.mxu0 0.0
  %188 = vmatprep.subr.mxu0 0.0
  %189 = vmatpush1.msra.mxu0 0.0
  %190 = vmatprep.subr.mxu0 0.0
  %191 = vmatpush1.msra.mxu0 0.0
  %192 = vmatprep.subr.mxu0 0.0
  %193 = vmatpush1.msra.mxu0 0.0
  %194 = vmatprep.subr.mxu0 0.0
  %195 = vmatpush1.msra.mxu0 0.0
  %196 = vmatprep.mubr.f32.mxu0 0.0
  %197 = vmatmul.mubr.f32.gmra.mrb[0].mxu0 %v109
  %v198 = vpop.f32.mrb[0].mxu0
  %v199 = vadd.f32 0.0, %v198
  %v200 = vpop.f32.mrb[0].mxu0
  %201 = vmatprep.mubr.f32.mxu0 0.0
  %202 = vmatmul.mubr.f32.gmra.mrb[0].mxu0 %v112
  %v203 = vpop.f32.mrb[0].mxu0
  %v204 = vadd.f32 0.0, %v203
  %v205 = vpop.f32.mrb[0].mxu0
  %206 = vmatprep.mubr.f32.mxu0 0.0
  %207 = vmatmul.mubr.f32.gmra.mrb[0].mxu0 %v115
  %v208 = vpop.f32.mrb[0].mxu0
  %v209 = vadd.f32 0.0, %v208
  %v210 = vpop.f32.mrb[0].mxu0
  %211 = vmatprep.mubr.f32.mxu0 0.0
  %212 = vmatmul.mubr.f32.gmra.mrb[0].mxu0 %v118
  %v213 = vpop.f32.mrb[0].mxu0
  %v214 = vadd.f32 0.0, %v213
  %v215 = vpop.f32.mrb[0].mxu0
  %216 = vmatprep.mubr.f32.mxu0 0.0
  %217 = vmatmul.mubr.f32.gmra.mrb[0].mxu0 %v121
  %v218 = vpop.f32.mrb[0].mxu0
  %v219 = vadd.f32 0.0, %v218
  %v220 = vpop.f32.mrb[0].mxu0
  %221 = vmatprep.mubr.f32.mxu0 0.0
  %222 = vmatmul.mubr.f32.gmra.mrb[0].mxu0 %v124
  %v223 = vpop.f32.mrb[0].mxu0
  %v224 = vadd.f32 0.0, %v223
  %v225 = vpop.f32.mrb[0].mxu0
  %226 = vmatprep.mubr.f32.mxu0 0.0
  %227 = vmatmul.mubr.f32.gmra.mrb[0].mxu0 %v127
  %v228 = vpop.f32.mrb[0].mxu0
  %v229 = vadd.f32 0.0, %v228
  %v230 = vpop.f32.mrb[0].mxu0
  %231 = vmatprep.mubr.f32.mxu0 0.0
  %232 = vmatmul.mubr.f32.gmra.mrb[0].mxu0 %v130
  %v233 = vpop.f32.mrb[0].mxu0
  %v234 = vadd.f32 0.0, %v233
  %v235 = vpop.f32.mrb[0].mxu0
  %236 = vdwg.mxu0
  %vm237 = vcmask 261120
  %v239 = vsel %vm237, 0.0, 0
  %241 = vmatprep.subr.mxu0 0.0
  %242 = vmatpush1.msra.mxu0 %v46
  %243 = vmatprep.subr.mxu0 0.0
  %244 = vmatpush1.msra.mxu0 %v47
  %245 = vmatprep.subr.mxu0 0.0
  %246 = vmatpush1.msra.mxu0 %v48
  %247 = vmatprep.subr.mxu0 0.0
  %248 = vmatpush1.msra.mxu0 %v49
  %249 = vmatprep.subr.mxu0 0.0
  %250 = vmatpush1.msra.mxu0 0.0
  %251 = vmatprep.subr.mxu0 0.0
  %252 = vmatpush1.msra.mxu0 0.0
  %253 = vmatprep.subr.mxu0 0.0
  %254 = vmatpush1.msra.mxu0 0.0
  %255 = vmatprep.subr.mxu0 0.0
  %256 = vmatpush1.msra.mxu0 0.0
  %257 = vmatprep.subr.mxu0 0.0
  %258 = vmatpush1.msra.mxu0 0.0
  %259 = vmatprep.subr.mxu0 0.0
  %260 = vmatpush1.msra.mxu0 0.0
  %261 = vmatprep.subr.mxu0 0.0
  %262 = vmatpush1.msra.mxu0 0.0
  %263 = vmatprep.subr.mxu0 0.0
  %264 = vmatpush1.msra.mxu0 0.0
  %265 = vmatprep.subr.mxu0 0.0
  %266 = vmatpush1.msra.mxu0 0.0
  %267 = vmatprep.subr.mxu0 0.0
  %268 = vmatpush1.msra.mxu0 0.0
  %269 = vmatprep.subr.mxu0 0.0
  %270 = vmatpush1.msra.mxu0 0.0
  %271 = vmatprep.subr.mxu0 0.0
  %272 = vmatpush1.msra.mxu0 0.0
  %273 = vmatprep.subr.mxu0 0.0
  %274 = vmatpush1.msra.mxu0 0.0
  %275 = vmatprep.subr.mxu0 0.0
  %276 = vmatpush1.msra.mxu0 0.0
  %277 = vmatprep.subr.mxu0 0.0
  %278 = vmatpush1.msra.mxu0 0.0
  %279 = vmatprep.subr.mxu0 0.0
  %280 = vmatpush1.msra.mxu0 0.0
  %281 = vmatprep.subr.mxu0 0.0
  %282 = vmatpush1.msra.mxu0 0.0
  %283 = vmatprep.subr.mxu0 0.0
  %284 = vmatpush1.msra.mxu0 0.0
  %285 = vmatprep.subr.mxu0 0.0
  %286 = vmatpush1.msra.mxu0 0.0
  %287 = vmatprep.subr.mxu0 0.0
  %288 = vmatpush1.msra.mxu0 0.0
  %289 = vmatprep.subr.mxu0 0.0
  %290 = vmatpush1.msra.mxu0 0.0
  %291 = vmatprep.subr.mxu0 0.0
  %292 = vmatpush1.msra.mxu0 0.0
  %293 = vmatprep.subr.mxu0 0.0
  %294 = vmatpush1.msra.mxu0 0.0
  %295 = vmatprep.subr.mxu0 0.0
  %296 = vmatpush1.msra.mxu0 0.0
  %297 = vmatprep.subr.mxu0 0.0
  %298 = vmatpush1.msra.mxu0 0.0
  %299 = vmatprep.subr.mxu0 0.0
  %300 = vmatpush1.msra.mxu0 0.0
  %301 = vmatprep.subr.mxu0 0.0
  %302 = vmatpush1.msra.mxu0 0.0
  %303 = vmatprep.subr.mxu0 0.0
  %304 = vmatpush1.msra.mxu0 0.0
  %305 = vmatprep.mubr.f32.mxu0 0.0
  %306 = vmatmul.mubr.f32.gmra.mrb[0].mxu0 %v239
  %v307 = vpop.f32.mrb[0].mxu0
  %v308 = vadd.f32 0.0, %v307
  %v309 = vpop.f32.mrb[0].mxu0
  %310 = vdwg.mxu0
  %v311 = vadd.f32 %v199, %v308
  %v312 = vxor.u32 %v311, 2147483648
  %v313 = vmul.f32 %v312, 1.442695
  %v314 = vpow.pop %v313
  %v315 = vadd.f32 %v314, 1.0
  %v316 = vrcp.pop %v315
  %v317 = vmul.f32 1.0, %v316
  %v318 = vtanh.pop %v311
  %v319 = vmul.f32 %v317, 0.0
  %321 = vrot.lane.b32.xlu0 %v318, 32
  %v322 = vpop.permute.xlu0 %321
  %v324 = vmul.f32 %v317, %v322
  %326 = vrot.lane.b32.xlu0 %v324, 32
  %v327 = vpop.permute.xlu0 %326
  %v329 = vadd.f32 %v319, %v327
  %v330 = vtanh.pop %v329
  %332 = vrot.lane.b32.xlu0 %v330, 32
  %v333 = vpop.permute.xlu0 %332
  %v335 = vmul.f32 %v317, %v333
  %vm336 = vcmp.gt.s32.totalorder %v45, 0
  %v337 = vsel %vm336, 1, 0
  %338 = vset.pattern.permute.xlu0 0
  %339 = vperm.xlu0 %338, %v337
  %v340 = vpop.permute.xlu0 %339
  %vm341 = vcmp.eq.s32.totalorder %v340, 1
  %v342 = vsel %vm341, %v335, 0.0
  %v343 = vsel %vm341, %v329, 0.0
  %345 = vrot.lane.b32.xlu0 %v342, 64
  %v346 = vpop.permute.xlu0 %345
  %v347 = vsel %vm237, %v346, 0
  %349 = vmatprep.subr.mxu0 0.0
  %350 = vmatpush1.msra.mxu0 %v46
  %351 = vmatprep.subr.mxu0 0.0
  %352 = vmatpush1.msra.mxu0 %v47
  %353 = vmatprep.subr.mxu0 0.0
  %354 = vmatpush1.msra.mxu0 %v48
  %355 = vmatprep.subr.mxu0 0.0
  %356 = vmatpush1.msra.mxu0 %v49
  %357 = vmatprep.subr.mxu0 0.0
  %358 = vmatpush1.msra.mxu0 0.0
  %359 = vmatprep.subr.mxu0 0.0
  %360 = vmatpush1.msra.mxu0 0.0
  %361 = vmatprep.subr.mxu0 0.0
  %362 = vmatpush1.msra.mxu0 0.0
  %363 = vmatprep.subr.mxu0 0.0
  %364 = vmatpush1.msra.mxu0 0.0
  %365 = vmatprep.subr.mxu0 0.0
  %366 = vmatpush1.msra.mxu0 0.0
  %367 = vmatprep.subr.mxu0 0.0
  %368 = vmatpush1.msra.mxu0 0.0
  %369 = vmatprep.subr.mxu0 0.0
  %370 = vmatpush1.msra.mxu0 0.0
  %371 = vmatprep.subr.mxu0 0.0
  %372 = vmatpush1.msra.mxu0 0.0
  %373 = vmatprep.subr.mxu0 0.0
  %374 = vmatpush1.msra.mxu0 0.0
  %375 = vmatprep.subr.mxu0 0.0
  %376 = vmatpush1.msra.mxu0 0.0
  %377 = vmatprep.subr.mxu0 0.0
  %378 = vmatpush1.msra.mxu0 0.0
  %379 = vmatprep.subr.mxu0 0.0
  %380 = vmatpush1.msra.mxu0 0.0
  %381 = vmatprep.subr.mxu0 0.0
  %382 = vmatpush1.msra.mxu0 0.0
  %383 = vmatprep.subr.mxu0 0.0
  %384 = vmatpush1.msra.mxu0 0.0
  %385 = vmatprep.subr.mxu0 0.0
  %386 = vmatpush1.msra.mxu0 0.0
  %387 = vmatprep.subr.mxu0 0.0
  %388 = vmatpush1.msra.mxu0 0.0
  %389 = vmatprep.subr.mxu0 0.0
  %390 = vmatpush1.msra.mxu0 0.0
  %391 = vmatprep.subr.mxu0 0.0
  %392 = vmatpush1.msra.mxu0 0.0
  %393 = vmatprep.subr.mxu0 0.0
  %394 = vmatpush1.msra.mxu0 0.0
  %395 = vmatprep.subr.mxu0 0.0
  %396 = vmatpush1.msra.mxu0 0.0
  %397 = vmatprep.subr.mxu0 0.0
  %398 = vmatpush1.msra.mxu0 0.0
  %399 = vmatprep.subr.mxu0 0.0
  %400 = vmatpush1.msra.mxu0 0.0
  %401 = vmatprep.subr.mxu0 0.0
  %402 = vmatpush1.msra.mxu0 0.0
  %403 = vmatprep.subr.mxu0 0.0
  %404 = vmatpush1.msra.mxu0 0.0
  %405 = vmatprep.subr.mxu0 0.0
  %406 = vmatpush1.msra.mxu0 0.0
  %407 = vmatprep.subr.mxu0 0.0
  %408 = vmatpush1.msra.mxu0 0.0
  %409 = vmatprep.subr.mxu0 0.0
  %410 = vmatpush1.msra.mxu0 0.0
  %411 = vmatprep.subr.mxu0 0.0
  %412 = vmatpush1.msra.mxu0 0.0
  %413 = vmatprep.mubr.f32.mxu0 0.0
  %414 = vmatmul.mubr.f32.gmra.mrb[0].mxu0 %v347
  %v415 = vpop.f32.mrb[0].mxu0
  %v416 = vadd.f32 0.0, %v415
  %v417 = vpop.f32.mrb[0].mxu0
  %418 = vdwg.mxu0
  %v419 = vadd.f32 %v204, %v416
  %v420 = vxor.u32 %v419, 2147483648
  %v421 = vmul.f32 %v420, 1.442695
  %v422 = vpow.pop %v421
  %v423 = vadd.f32 %v422, 1.0
  %v424 = vrcp.pop %v423
  %v425 = vmul.f32 1.0, %v424
  %v426 = vtanh.pop %v419
  %v427 = vmul.f32 %v425, %v343
  %429 = vrot.lane.b32.xlu0 %v426, 32
  %v430 = vpop.permute.xlu0 %429
  %v432 = vmul.f32 %v425, %v430
  %434 = vrot.lane.b32.xlu0 %v432, 32
  %v435 = vpop.permute.xlu0 %434
  %v437 = vadd.f32 %v427, %v435
  %v438 = vtanh.pop %v437
  %440 = vrot.lane.b32.xlu0 %v438, 32
  %v441 = vpop.permute.xlu0 %440
  %v443 = vmul.f32 %v425, %v441
  %vm444 = vcmp.gt.s32.totalorder %v45, 1
  %v445 = vsel %vm444, 1, 0
  %446 = vset.pattern.permute.xlu0 0
  %447 = vperm.xlu0 %446, %v445
  %v448 = vpop.permute.xlu0 %447
  %vm449 = vcmp.eq.s32.totalorder %v448, 1
  %v450 = vsel %vm449, %v443, %v342
  %v451 = vsel %vm449, %v437, %v343
  %453 = vrot.lane.b32.xlu0 %v450, 64
  %v454 = vpop.permute.xlu0 %453
  %v455 = vsel %vm237, %v454, 0
  %457 = vmatprep.subr.mxu0 0.0
  %458 = vmatpush1.msra.mxu0 %v46
  %459 = vmatprep.subr.mxu0 0.0
  %460 = vmatpush1.msra.mxu0 %v47
  %461 = vmatprep.subr.mxu0 0.0
  %462 = vmatpush1.msra.mxu0 %v48
  %463 = vmatprep.subr.mxu0 0.0
  %464 = vmatpush1.msra.mxu0 %v49
  %465 = vmatprep.subr.mxu0 0.0
  %466 = vmatpush1.msra.mxu0 0.0
  %467 = vmatprep.subr.mxu0 0.0
  %468 = vmatpush1.msra.mxu0 0.0
  %469 = vmatprep.subr.mxu0 0.0
  %470 = vmatpush1.msra.mxu0 0.0
  %471 = vmatprep.subr.mxu0 0.0
  %472 = vmatpush1.msra.mxu0 0.0
  %473 = vmatprep.subr.mxu0 0.0
  %474 = vmatpush1.msra.mxu0 0.0
  %475 = vmatprep.subr.mxu0 0.0
  %476 = vmatpush1.msra.mxu0 0.0
  %477 = vmatprep.subr.mxu0 0.0
  %478 = vmatpush1.msra.mxu0 0.0
  %479 = vmatprep.subr.mxu0 0.0
  %480 = vmatpush1.msra.mxu0 0.0
  %481 = vmatprep.subr.mxu0 0.0
  %482 = vmatpush1.msra.mxu0 0.0
  %483 = vmatprep.subr.mxu0 0.0
  %484 = vmatpush1.msra.mxu0 0.0
  %485 = vmatprep.subr.mxu0 0.0
  %486 = vmatpush1.msra.mxu0 0.0
  %487 = vmatprep.subr.mxu0 0.0
  %488 = vmatpush1.msra.mxu0 0.0
  %489 = vmatprep.subr.mxu0 0.0
  %490 = vmatpush1.msra.mxu0 0.0
  %491 = vmatprep.subr.mxu0 0.0
  %492 = vmatpush1.msra.mxu0 0.0
  %493 = vmatprep.subr.mxu0 0.0
  %494 = vmatpush1.msra.mxu0 0.0
  %495 = vmatprep.subr.mxu0 0.0
  %496 = vmatpush1.msra.mxu0 0.0
  %497 = vmatprep.subr.mxu0 0.0
  %498 = vmatpush1.msra.mxu0 0.0
  %499 = vmatprep.subr.mxu0 0.0
  %500 = vmatpush1.msra.mxu0 0.0
  %501 = vmatprep.subr.mxu0 0.0
  %502 = vmatpush1.msra.mxu0 0.0
  %503 = vmatprep.subr.mxu0 0.0
  %504 = vmatpush1.msra.mxu0 0.0
  %505 = vmatprep.subr.mxu0 0.0
  %506 = vmatpush1.msra.mxu0 0.0
  %507 = vmatprep.subr.mxu0 0.0
  %508 = vmatpush1.msra.mxu0 0.0
  %509 = vmatprep.subr.mxu0 0.0
  %510 = vmatpush1.msra.mxu0 0.0
  %511 = vmatprep.subr.mxu0 0.0
  %512 = vmatpush1.msra.mxu0 0.0
  %513 = vmatprep.subr.mxu0 0.0
  %514 = vmatpush1.msra.mxu0 0.0
  %515 = vmatprep.subr.mxu0 0.0
  %516 = vmatpush1.msra.mxu0 0.0
  %517 = vmatprep.subr.mxu0 0.0
  %518 = vmatpush1.msra.mxu0 0.0
  %519 = vmatprep.subr.mxu0 0.0
  %520 = vmatpush1.msra.mxu0 0.0
  %521 = vmatprep.mubr.f32.mxu0 0.0
  %522 = vmatmul.mubr.f32.gmra.mrb[0].mxu0 %v455
  %v523 = vpop.f32.mrb[0].mxu0
  %v524 = vadd.f32 0.0, %v523
  %v525 = vpop.f32.mrb[0].mxu0
  %526 = vdwg.mxu0
  %v527 = vadd.f32 %v209, %v524
  %v528 = vxor.u32 %v527, 2147483648
  %v529 = vmul.f32 %v528, 1.442695
  %v530 = vpow.pop %v529
  %v531 = vadd.f32 %v530, 1.0
  %v532 = vrcp.pop %v531
  %v533 = vmul.f32 1.0, %v532
  %v534 = vtanh.pop %v527
  %v535 = vmul.f32 %v533, %v451
  %537 = vrot.lane.b32.xlu0 %v534, 32
  %v538 = vpop.permute.xlu0 %537
  %v540 = vmul.f32 %v533, %v538
  %542 = vrot.lane.b32.xlu0 %v540, 32
  %v543 = vpop.permute.xlu0 %542
  %v545 = vadd.f32 %v535, %v543
  %v546 = vtanh.pop %v545
  %548 = vrot.lane.b32.xlu0 %v546, 32
  %v549 = vpop.permute.xlu0 %548
  %v551 = vmul.f32 %v533, %v549
  %vm552 = vcmp.gt.s32.totalorder %v45, 2
  %v553 = vsel %vm552, 1, 0
  %554 = vset.pattern.permute.xlu0 0
  %555 = vperm.xlu0 %554, %v553
  %v556 = vpop.permute.xlu0 %555
  %vm557 = vcmp.eq.s32.totalorder %v556, 1
  %v558 = vsel %vm557, %v551, %v450
  %v559 = vsel %vm557, %v545, %v451
  %561 = vrot.lane.b32.xlu0 %v558, 64
  %v562 = vpop.permute.xlu0 %561
  %v563 = vsel %vm237, %v562, 0
  %565 = vmatprep.subr.mxu0 0.0
  %566 = vmatpush1.msra.mxu0 %v46
  %567 = vmatprep.subr.mxu0 0.0
  %568 = vmatpush1.msra.mxu0 %v47
  %569 = vmatprep.subr.mxu0 0.0
  %570 = vmatpush1.msra.mxu0 %v48
  %571 = vmatprep.subr.mxu0 0.0
  %572 = vmatpush1.msra.mxu0 %v49
  %573 = vmatprep.subr.mxu0 0.0
  %574 = vmatpush1.msra.mxu0 0.0
  %575 = vmatprep.subr.mxu0 0.0
  %576 = vmatpush1.msra.mxu0 0.0
  %577 = vmatprep.subr.mxu0 0.0
  %578 = vmatpush1.msra.mxu0 0.0
  %579 = vmatprep.subr.mxu0 0.0
  %580 = vmatpush1.msra.mxu0 0.0
  %581 = vmatprep.subr.mxu0 0.0
  %582 = vmatpush1.msra.mxu0 0.0
  %583 = vmatprep.subr.mxu0 0.0
  %584 = vmatpush1.msra.mxu0 0.0
  %585 = vmatprep.subr.mxu0 0.0
  %586 = vmatpush1.msra.mxu0 0.0
  %587 = vmatprep.subr.mxu0 0.0
  %588 = vmatpush1.msra.mxu0 0.0
  %589 = vmatprep.subr.mxu0 0.0
  %590 = vmatpush1.msra.mxu0 0.0
  %591 = vmatprep.subr.mxu0 0.0
  %592 = vmatpush1.msra.mxu0 0.0
  %593 = vmatprep.subr.mxu0 0.0
  %594 = vmatpush1.msra.mxu0 0.0
  %595 = vmatprep.subr.mxu0 0.0
  %596 = vmatpush1.msra.mxu0 0.0
  %597 = vmatprep.subr.mxu0 0.0
  %598 = vmatpush1.msra.mxu0 0.0
  %599 = vmatprep.subr.mxu0 0.0
  %600 = vmatpush1.msra.mxu0 0.0
  %601 = vmatprep.subr.mxu0 0.0
  %602 = vmatpush1.msra.mxu0 0.0
  %603 = vmatprep.subr.mxu0 0.0
  %604 = vmatpush1.msra.mxu0 0.0
  %605 = vmatprep.subr.mxu0 0.0
  %606 = vmatpush1.msra.mxu0 0.0
  %607 = vmatprep.subr.mxu0 0.0
  %608 = vmatpush1.msra.mxu0 0.0
  %609 = vmatprep.subr.mxu0 0.0
  %610 = vmatpush1.msra.mxu0 0.0
  %611 = vmatprep.subr.mxu0 0.0
  %612 = vmatpush1.msra.mxu0 0.0
  %613 = vmatprep.subr.mxu0 0.0
  %614 = vmatpush1.msra.mxu0 0.0
  %615 = vmatprep.subr.mxu0 0.0
  %616 = vmatpush1.msra.mxu0 0.0
  %617 = vmatprep.subr.mxu0 0.0
  %618 = vmatpush1.msra.mxu0 0.0
  %619 = vmatprep.subr.mxu0 0.0
  %620 = vmatpush1.msra.mxu0 0.0
  %621 = vmatprep.subr.mxu0 0.0
  %622 = vmatpush1.msra.mxu0 0.0
  %623 = vmatprep.subr.mxu0 0.0
  %624 = vmatpush1.msra.mxu0 0.0
  %625 = vmatprep.subr.mxu0 0.0
  %626 = vmatpush1.msra.mxu0 0.0
  %627 = vmatprep.subr.mxu0 0.0
  %628 = vmatpush1.msra.mxu0 0.0
  %629 = vmatprep.mubr.f32.mxu0 0.0
  %630 = vmatmul.mubr.f32.gmra.mrb[0].mxu0 %v563
  %v631 = vpop.f32.mrb[0].mxu0
  %v632 = vadd.f32 0.0, %v631
  %v633 = vpop.f32.mrb[0].mxu0
  %634 = vdwg.mxu0
  %v635 = vadd.f32 %v214, %v632
  %v636 = vxor.u32 %v635, 2147483648
  %v637 = vmul.f32 %v636, 1.442695
  %v638 = vpow.pop %v637
  %v639 = vadd.f32 %v638, 1.0
  %v640 = vrcp.pop %v639
  %v641 = vmul.f32 1.0, %v640
  %v642 = vtanh.pop %v635
  %v643 = vmul.f32 %v641, %v559
  %645 = vrot.lane.b32.xlu0 %v642, 32
  %v646 = vpop.permute.xlu0 %645
  %v648 = vmul.f32 %v641, %v646
  %650 = vrot.lane.b32.xlu0 %v648, 32
  %v651 = vpop.permute.xlu0 %650
  %v653 = vadd.f32 %v643, %v651
  %v654 = vtanh.pop %v653
  %656 = vrot.lane.b32.xlu0 %v654, 32
  %v657 = vpop.permute.xlu0 %656
  %v659 = vmul.f32 %v641, %v657
  %vm660 = vcmp.gt.s32.totalorder %v45, 3
  %v661 = vsel %vm660, 1, 0
  %662 = vset.pattern.permute.xlu0 0
  %663 = vperm.xlu0 %662, %v661
  %v664 = vpop.permute.xlu0 %663
  %vm665 = vcmp.eq.s32.totalorder %v664, 1
  %v666 = vsel %vm665, %v659, %v558
  %v667 = vsel %vm665, %v653, %v559
  %669 = vrot.lane.b32.xlu0 %v666, 64
  %v670 = vpop.permute.xlu0 %669
  %v671 = vsel %vm237, %v670, 0
  %673 = vmatprep.subr.mxu0 0.0
  %674 = vmatpush1.msra.mxu0 %v46
  %675 = vmatprep.subr.mxu0 0.0
  %676 = vmatpush1.msra.mxu0 %v47
  %677 = vmatprep.subr.mxu0 0.0
  %678 = vmatpush1.msra.mxu0 %v48
  %679 = vmatprep.subr.mxu0 0.0
  %680 = vmatpush1.msra.mxu0 %v49
  %681 = vmatprep.subr.mxu0 0.0
  %682 = vmatpush1.msra.mxu0 0.0
  %683 = vmatprep.subr.mxu0 0.0
  %684 = vmatpush1.msra.mxu0 0.0
  %685 = vmatprep.subr.mxu0 0.0
  %686 = vmatpush1.msra.mxu0 0.0
  %687 = vmatprep.subr.mxu0 0.0
  %688 = vmatpush1.msra.mxu0 0.0
  %689 = vmatprep.subr.mxu0 0.0
  %690 = vmatpush1.msra.mxu0 0.0
  %691 = vmatprep.subr.mxu0 0.0
  %692 = vmatpush1.msra.mxu0 0.0
  %693 = vmatprep.subr.mxu0 0.0
  %694 = vmatpush1.msra.mxu0 0.0
  %695 = vmatprep.subr.mxu0 0.0
  %696 = vmatpush1.msra.mxu0 0.0
  %697 = vmatprep.subr.mxu0 0.0
  %698 = vmatpush1.msra.mxu0 0.0
  %699 = vmatprep.subr.mxu0 0.0
  %700 = vmatpush1.msra.mxu0 0.0
  %701 = vmatprep.subr.mxu0 0.0
  %702 = vmatpush1.msra.mxu0 0.0
  %703 = vmatprep.subr.mxu0 0.0
  %704 = vmatpush1.msra.mxu0 0.0
  %705 = vmatprep.subr.mxu0 0.0
  %706 = vmatpush1.msra.mxu0 0.0
  %707 = vmatprep.subr.mxu0 0.0
  %708 = vmatpush1.msra.mxu0 0.0
  %709 = vmatprep.subr.mxu0 0.0
  %710 = vmatpush1.msra.mxu0 0.0
  %711 = vmatprep.subr.mxu0 0.0
  %712 = vmatpush1.msra.mxu0 0.0
  %713 = vmatprep.subr.mxu0 0.0
  %714 = vmatpush1.msra.mxu0 0.0
  %715 = vmatprep.subr.mxu0 0.0
  %716 = vmatpush1.msra.mxu0 0.0
  %717 = vmatprep.subr.mxu0 0.0
  %718 = vmatpush1.msra.mxu0 0.0
  %719 = vmatprep.subr.mxu0 0.0
  %720 = vmatpush1.msra.mxu0 0.0
  %721 = vmatprep.subr.mxu0 0.0
  %722 = vmatpush1.msra.mxu0 0.0
  %723 = vmatprep.subr.mxu0 0.0
  %724 = vmatpush1.msra.mxu0 0.0
  %725 = vmatprep.subr.mxu0 0.0
  %726 = vmatpush1.msra.mxu0 0.0
  %727 = vmatprep.subr.mxu0 0.0
  %728 = vmatpush1.msra.mxu0 0.0
  %729 = vmatprep.subr.mxu0 0.0
  %730 = vmatpush1.msra.mxu0 0.0
  %731 = vmatprep.subr.mxu0 0.0
  %732 = vmatpush1.msra.mxu0 0.0
  %733 = vmatprep.subr.mxu0 0.0
  %734 = vmatpush1.msra.mxu0 0.0
  %735 = vmatprep.subr.mxu0 0.0
  %736 = vmatpush1.msra.mxu0 0.0
  %737 = vmatprep.mubr.f32.mxu0 0.0
  %738 = vmatmul.mubr.f32.gmra.mrb[0].mxu0 %v671
  %v739 = vpop.f32.mrb[0].mxu0
  %v740 = vadd.f32 0.0, %v739
  %v741 = vpop.f32.mrb[0].mxu0
  %742 = vdwg.mxu0
  %v743 = vadd.f32 %v219, %v740
  %v744 = vxor.u32 %v743, 2147483648
  %v745 = vmul.f32 %v744, 1.442695
  %v746 = vpow.pop %v745
  %v747 = vadd.f32 %v746, 1.0
  %v748 = vrcp.pop %v747
  %v749 = vmul.f32 1.0, %v748
  %v750 = vtanh.pop %v743
  %v751 = vmul.f32 %v749, %v667
  %753 = vrot.lane.b32.xlu0 %v750, 32
  %v754 = vpop.permute.xlu0 %753
  %v756 = vmul.f32 %v749, %v754
  %758 = vrot.lane.b32.xlu0 %v756, 32
  %v759 = vpop.permute.xlu0 %758
  %v761 = vadd.f32 %v751, %v759
  %v762 = vtanh.pop %v761
  %764 = vrot.lane.b32.xlu0 %v762, 32
  %v765 = vpop.permute.xlu0 %764
  %v767 = vmul.f32 %v749, %v765
  %vm768 = vcmp.gt.s32.totalorder %v45, 4
  %v769 = vsel %vm768, 1, 0
  %770 = vset.pattern.permute.xlu0 0
  %771 = vperm.xlu0 %770, %v769
  %v772 = vpop.permute.xlu0 %771
  %vm773 = vcmp.eq.s32.totalorder %v772, 1
  %v774 = vsel %vm773, %v767, %v666
  %v775 = vsel %vm773, %v761, %v667
  %777 = vrot.lane.b32.xlu0 %v774, 64
  %v778 = vpop.permute.xlu0 %777
  %v779 = vsel %vm237, %v778, 0
  %781 = vmatprep.subr.mxu0 0.0
  %782 = vmatpush1.msra.mxu0 %v46
  %783 = vmatprep.subr.mxu0 0.0
  %784 = vmatpush1.msra.mxu0 %v47
  %785 = vmatprep.subr.mxu0 0.0
  %786 = vmatpush1.msra.mxu0 %v48
  %787 = vmatprep.subr.mxu0 0.0
  %788 = vmatpush1.msra.mxu0 %v49
  %789 = vmatprep.subr.mxu0 0.0
  %790 = vmatpush1.msra.mxu0 0.0
  %791 = vmatprep.subr.mxu0 0.0
  %792 = vmatpush1.msra.mxu0 0.0
  %793 = vmatprep.subr.mxu0 0.0
  %794 = vmatpush1.msra.mxu0 0.0
  %795 = vmatprep.subr.mxu0 0.0
  %796 = vmatpush1.msra.mxu0 0.0
  %797 = vmatprep.subr.mxu0 0.0
  %798 = vmatpush1.msra.mxu0 0.0
  %799 = vmatprep.subr.mxu0 0.0
  %800 = vmatpush1.msra.mxu0 0.0
  %801 = vmatprep.subr.mxu0 0.0
  %802 = vmatpush1.msra.mxu0 0.0
  %803 = vmatprep.subr.mxu0 0.0
  %804 = vmatpush1.msra.mxu0 0.0
  %805 = vmatprep.subr.mxu0 0.0
  %806 = vmatpush1.msra.mxu0 0.0
  %807 = vmatprep.subr.mxu0 0.0
  %808 = vmatpush1.msra.mxu0 0.0
  %809 = vmatprep.subr.mxu0 0.0
  %810 = vmatpush1.msra.mxu0 0.0
  %811 = vmatprep.subr.mxu0 0.0
  %812 = vmatpush1.msra.mxu0 0.0
  %813 = vmatprep.subr.mxu0 0.0
  %814 = vmatpush1.msra.mxu0 0.0
  %815 = vmatprep.subr.mxu0 0.0
  %816 = vmatpush1.msra.mxu0 0.0
  %817 = vmatprep.subr.mxu0 0.0
  %818 = vmatpush1.msra.mxu0 0.0
  %819 = vmatprep.subr.mxu0 0.0
  %820 = vmatpush1.msra.mxu0 0.0
  %821 = vmatprep.subr.mxu0 0.0
  %822 = vmatpush1.msra.mxu0 0.0
  %823 = vmatprep.subr.mxu0 0.0
  %824 = vmatpush1.msra.mxu0 0.0
  %825 = vmatprep.subr.mxu0 0.0
  %826 = vmatpush1.msra.mxu0 0.0
  %827 = vmatprep.subr.mxu0 0.0
  %828 = vmatpush1.msra.mxu0 0.0
  %829 = vmatprep.subr.mxu0 0.0
  %830 = vmatpush1.msra.mxu0 0.0
  %831 = vmatprep.subr.mxu0 0.0
  %832 = vmatpush1.msra.mxu0 0.0
  %833 = vmatprep.subr.mxu0 0.0
  %834 = vmatpush1.msra.mxu0 0.0
  %835 = vmatprep.subr.mxu0 0.0
  %836 = vmatpush1.msra.mxu0 0.0
  %837 = vmatprep.subr.mxu0 0.0
  %838 = vmatpush1.msra.mxu0 0.0
  %839 = vmatprep.subr.mxu0 0.0
  %840 = vmatpush1.msra.mxu0 0.0
  %841 = vmatprep.subr.mxu0 0.0
  %842 = vmatpush1.msra.mxu0 0.0
  %843 = vmatprep.subr.mxu0 0.0
  %844 = vmatpush1.msra.mxu0 0.0
  %845 = vmatprep.mubr.f32.mxu0 0.0
  %846 = vmatmul.mubr.f32.gmra.mrb[0].mxu0 %v779
  %v847 = vpop.f32.mrb[0].mxu0
  %v848 = vadd.f32 0.0, %v847
  %v849 = vpop.f32.mrb[0].mxu0
  %850 = vdwg.mxu0
  %v851 = vadd.f32 %v224, %v848
  %v852 = vxor.u32 %v851, 2147483648
  %v853 = vmul.f32 %v852, 1.442695
  %v854 = vpow.pop %v853
  %v855 = vadd.f32 %v854, 1.0
  %v856 = vrcp.pop %v855
  %v857 = vmul.f32 1.0, %v856
  %v858 = vtanh.pop %v851
  %v859 = vmul.f32 %v857, %v775
  %861 = vrot.lane.b32.xlu0 %v858, 32
  %v862 = vpop.permute.xlu0 %861
  %v864 = vmul.f32 %v857, %v862
  %866 = vrot.lane.b32.xlu0 %v864, 32
  %v867 = vpop.permute.xlu0 %866
  %v869 = vadd.f32 %v859, %v867
  %v870 = vtanh.pop %v869
  %872 = vrot.lane.b32.xlu0 %v870, 32
  %v873 = vpop.permute.xlu0 %872
  %v875 = vmul.f32 %v857, %v873
  %vm876 = vcmp.gt.s32.totalorder %v45, 5
  %v877 = vsel %vm876, 1, 0
  %878 = vset.pattern.permute.xlu0 0
  %879 = vperm.xlu0 %878, %v877
  %v880 = vpop.permute.xlu0 %879
  %vm881 = vcmp.eq.s32.totalorder %v880, 1
  %v882 = vsel %vm881, %v875, %v774
  %v883 = vsel %vm881, %v869, %v775
  %885 = vrot.lane.b32.xlu0 %v882, 64
  %v886 = vpop.permute.xlu0 %885
  %v887 = vsel %vm237, %v886, 0
  %889 = vmatprep.subr.mxu0 0.0
  %890 = vmatpush1.msra.mxu0 %v46
  %891 = vmatprep.subr.mxu0 0.0
  %892 = vmatpush1.msra.mxu0 %v47
  %893 = vmatprep.subr.mxu0 0.0
  %894 = vmatpush1.msra.mxu0 %v48
  %895 = vmatprep.subr.mxu0 0.0
  %896 = vmatpush1.msra.mxu0 %v49
  %897 = vmatprep.subr.mxu0 0.0
  %898 = vmatpush1.msra.mxu0 0.0
  %899 = vmatprep.subr.mxu0 0.0
  %900 = vmatpush1.msra.mxu0 0.0
  %901 = vmatprep.subr.mxu0 0.0
  %902 = vmatpush1.msra.mxu0 0.0
  %903 = vmatprep.subr.mxu0 0.0
  %904 = vmatpush1.msra.mxu0 0.0
  %905 = vmatprep.subr.mxu0 0.0
  %906 = vmatpush1.msra.mxu0 0.0
  %907 = vmatprep.subr.mxu0 0.0
  %908 = vmatpush1.msra.mxu0 0.0
  %909 = vmatprep.subr.mxu0 0.0
  %910 = vmatpush1.msra.mxu0 0.0
  %911 = vmatprep.subr.mxu0 0.0
  %912 = vmatpush1.msra.mxu0 0.0
  %913 = vmatprep.subr.mxu0 0.0
  %914 = vmatpush1.msra.mxu0 0.0
  %915 = vmatprep.subr.mxu0 0.0
  %916 = vmatpush1.msra.mxu0 0.0
  %917 = vmatprep.subr.mxu0 0.0
  %918 = vmatpush1.msra.mxu0 0.0
  %919 = vmatprep.subr.mxu0 0.0
  %920 = vmatpush1.msra.mxu0 0.0
  %921 = vmatprep.subr.mxu0 0.0
  %922 = vmatpush1.msra.mxu0 0.0
  %923 = vmatprep.subr.mxu0 0.0
  %924 = vmatpush1.msra.mxu0 0.0
  %925 = vmatprep.subr.mxu0 0.0
  %926 = vmatpush1.msra.mxu0 0.0
  %927 = vmatprep.subr.mxu0 0.0
  %928 = vmatpush1.msra.mxu0 0.0
  %929 = vmatprep.subr.mxu0 0.0
  %930 = vmatpush1.msra.mxu0 0.0
  %931 = vmatprep.subr.mxu0 0.0
  %932 = vmatpush1.msra.mxu0 0.0
  %933 = vmatprep.subr.mxu0 0.0
  %934 = vmatpush1.msra.mxu0 0.0
  %935 = vmatprep.subr.mxu0 0.0
  %936 = vmatpush1.msra.mxu0 0.0
  %937 = vmatprep.subr.mxu0 0.0
  %938 = vmatpush1.msra.mxu0 0.0
  %939 = vmatprep.subr.mxu0 0.0
  %940 = vmatpush1.msra.mxu0 0.0
  %941 = vmatprep.subr.mxu0 0.0
  %942 = vmatpush1.msra.mxu0 0.0
  %943 = vmatprep.subr.mxu0 0.0
  %944 = vmatpush1.msra.mxu0 0.0
  %945 = vmatprep.subr.mxu0 0.0
  %946 = vmatpush1.msra.mxu0 0.0
  %947 = vmatprep.subr.mxu0 0.0
  %948 = vmatpush1.msra.mxu0 0.0
  %949 = vmatprep.subr.mxu0 0.0
  %950 = vmatpush1.msra.mxu0 0.0
  %951 = vmatprep.subr.mxu0 0.0
  %952 = vmatpush1.msra.mxu0 0.0
  %953 = vmatprep.mubr.f32.mxu0 0.0
  %954 = vmatmul.mubr.f32.gmra.mrb[0].mxu0 %v887
  %v955 = vpop.f32.mrb[0].mxu0
  %v956 = vadd.f32 0.0, %v955
  %v957 = vpop.f32.mrb[0].mxu0
  %958 = vdwg.mxu0
  %v959 = vadd.f32 %v229, %v956
  %v960 = vxor.u32 %v959, 2147483648
  %v961 = vmul.f32 %v960, 1.442695
  %v962 = vpow.pop %v961
  %v963 = vadd.f32 %v962, 1.0
  %v964 = vrcp.pop %v963
  %v965 = vmul.f32 1.0, %v964
  %v966 = vtanh.pop %v959
  %v967 = vmul.f32 %v965, %v883
  %969 = vrot.lane.b32.xlu0 %v966, 32
  %v970 = vpop.permute.xlu0 %969
  %v972 = vmul.f32 %v965, %v970
  %974 = vrot.lane.b32.xlu0 %v972, 32
  %v975 = vpop.permute.xlu0 %974
  %v977 = vadd.f32 %v967, %v975
  %v978 = vtanh.pop %v977
  %980 = vrot.lane.b32.xlu0 %v978, 32
  %v981 = vpop.permute.xlu0 %980
  %v983 = vmul.f32 %v965, %v981
  %vm984 = vcmp.gt.s32.totalorder %v45, 6
  %v985 = vsel %vm984, 1, 0
  %986 = vset.pattern.permute.xlu0 0
  %987 = vperm.xlu0 %986, %v985
  %v988 = vpop.permute.xlu0 %987
  %vm989 = vcmp.eq.s32.totalorder %v988, 1
  %v990 = vsel %vm989, %v983, %v882
  %v991 = vsel %vm989, %v977, %v883
  %993 = vrot.lane.b32.xlu0 %v990, 64
  %v994 = vpop.permute.xlu0 %993
  %v995 = vsel %vm237, %v994, 0
  %997 = vmatprep.subr.mxu0 0.0
  %998 = vmatpush1.msra.mxu0 %v46
  %999 = vmatprep.subr.mxu0 0.0
  %1000 = vmatpush1.msra.mxu0 %v47
  %1001 = vmatprep.subr.mxu0 0.0
  %1002 = vmatpush1.msra.mxu0 %v48
  %1003 = vmatprep.subr.mxu0 0.0
  %1004 = vmatpush1.msra.mxu0 %v49
  %1005 = vmatprep.subr.mxu0 0.0
  %1006 = vmatpush1.msra.mxu0 0.0
  %1007 = vmatprep.subr.mxu0 0.0
  %1008 = vmatpush1.msra.mxu0 0.0
  %1009 = vmatprep.subr.mxu0 0.0
  %1010 = vmatpush1.msra.mxu0 0.0
  %1011 = vmatprep.subr.mxu0 0.0
  %1012 = vmatpush1.msra.mxu0 0.0
  %1013 = vmatprep.subr.mxu0 0.0
  %1014 = vmatpush1.msra.mxu0 0.0
  %1015 = vmatprep.subr.mxu0 0.0
  %1016 = vmatpush1.msra.mxu0 0.0
  %1017 = vmatprep.subr.mxu0 0.0
  %1018 = vmatpush1.msra.mxu0 0.0
  %1019 = vmatprep.subr.mxu0 0.0
  %1020 = vmatpush1.msra.mxu0 0.0
  %1021 = vmatprep.subr.mxu0 0.0
  %1022 = vmatpush1.msra.mxu0 0.0
  %1023 = vmatprep.subr.mxu0 0.0
  %1024 = vmatpush1.msra.mxu0 0.0
  %1025 = vmatprep.subr.mxu0 0.0
  %1026 = vmatpush1.msra.mxu0 0.0
  %1027 = vmatprep.subr.mxu0 0.0
  %1028 = vmatpush1.msra.mxu0 0.0
  %1029 = vmatprep.subr.mxu0 0.0
  %1030 = vmatpush1.msra.mxu0 0.0
  %1031 = vmatprep.subr.mxu0 0.0
  %1032 = vmatpush1.msra.mxu0 0.0
  %1033 = vmatprep.subr.mxu0 0.0
  %1034 = vmatpush1.msra.mxu0 0.0
  %1035 = vmatprep.subr.mxu0 0.0
  %1036 = vmatpush1.msra.mxu0 0.0
  %1037 = vmatprep.subr.mxu0 0.0
  %1038 = vmatpush1.msra.mxu0 0.0
  %1039 = vmatprep.subr.mxu0 0.0
  %1040 = vmatpush1.msra.mxu0 0.0
  %1041 = vmatprep.subr.mxu0 0.0
  %1042 = vmatpush1.msra.mxu0 0.0
  %1043 = vmatprep.subr.mxu0 0.0
  %1044 = vmatpush1.msra.mxu0 0.0
  %1045 = vmatprep.subr.mxu0 0.0
  %1046 = vmatpush1.msra.mxu0 0.0
  %1047 = vmatprep.subr.mxu0 0.0
  %1048 = vmatpush1.msra.mxu0 0.0
  %1049 = vmatprep.subr.mxu0 0.0
  %1050 = vmatpush1.msra.mxu0 0.0
  %1051 = vmatprep.subr.mxu0 0.0
  %1052 = vmatpush1.msra.mxu0 0.0
  %1053 = vmatprep.subr.mxu0 0.0
  %1054 = vmatpush1.msra.mxu0 0.0
  %1055 = vmatprep.subr.mxu0 0.0
  %1056 = vmatpush1.msra.mxu0 0.0
  %1057 = vmatprep.subr.mxu0 0.0
  %1058 = vmatpush1.msra.mxu0 0.0
  %1059 = vmatprep.subr.mxu0 0.0
  %1060 = vmatpush1.msra.mxu0 0.0
  %1061 = vmatprep.mubr.f32.mxu0 0.0
  %1062 = vmatmul.mubr.f32.gmra.mrb[0].mxu0 %v995
  %v1063 = vpop.f32.mrb[0].mxu0
  %v1064 = vadd.f32 0.0, %v1063
  %v1065 = vpop.f32.mrb[0].mxu0
  %1066 = vdwg.mxu0
  %v1067 = vadd.f32 %v234, %v1064
  %v1068 = vxor.u32 %v1067, 2147483648
  %v1069 = vmul.f32 %v1068, 1.442695
  %v1070 = vpow.pop %v1069
  %v1071 = vadd.f32 %v1070, 1.0
  %v1072 = vrcp.pop %v1071
  %v1073 = vmul.f32 1.0, %v1072
  %v1074 = vtanh.pop %v1067
  %v1075 = vmul.f32 %v1073, %v991
  %1077 = vrot.lane.b32.xlu0 %v1074, 32
  %v1078 = vpop.permute.xlu0 %1077
  %v1080 = vmul.f32 %v1073, %v1078
  %1082 = vrot.lane.b32.xlu0 %v1080, 32
  %v1083 = vpop.permute.xlu0 %1082
  %v1085 = vadd.f32 %v1075, %v1083
  %v1086 = vtanh.pop %v1085
  %1088 = vrot.lane.b32.xlu0 %v1086, 32
  %v1089 = vpop.permute.xlu0 %1088
  %v1091 = vmul.f32 %v1073, %v1089
  %vm1092 = vcmp.gt.s32.totalorder %v45, 7
  %v1093 = vsel %vm1092, 1, 0
  %1094 = vset.pattern.permute.xlu0 0
  %1095 = vperm.xlu0 %1094, %v1093
  %v1096 = vpop.permute.xlu0 %1095
  %vm1097 = vcmp.eq.s32.totalorder %v1096, 1
  %v1098 = vsel %vm1097, %v1091, %v990
  %v1099 = vld [vmem:[%s4] sm:$0xff]
  %v1100 = vld [vmem:[%s4 + $0x8] sm:$0xff]
  %v1101 = vld [vmem:[%s4 + $0x10] sm:$0xff]
  %v1102 = vld [vmem:[%s4 + $0x18] sm:$0xff]
  %v1103 = vld [vmem:[%s5] sm:$0x1]
  %v1105 = vlaneseq
  %v1106 = vshrl.u32 %v1105, 7
  %v1107 = vsub.s32 0, %v1106
  %v1108 = vrot.slane %v1103, %v1107
  %1111 = vrot.lane.b32.xlu0 %v1098, 64
  %v1112 = vpop.permute.xlu0 %1111
  %v1113 = vsel %vm237, %v1112, 0
  %1115 = vmatprep.subr.mxu0 0.0
  %1116 = vmatpush1.msra.mxu0 %v1099
  %1117 = vmatprep.subr.mxu0 0.0
  %1118 = vmatpush1.msra.mxu0 %v1100
  %1119 = vmatprep.subr.mxu0 0.0
  %1120 = vmatpush1.msra.mxu0 %v1101
  %1121 = vmatprep.subr.mxu0 0.0
  %1122 = vmatpush1.msra.mxu0 %v1102
  %1123 = vmatprep.subr.mxu0 0.0
  %1124 = vmatpush1.msra.mxu0 0.0
  %1125 = vmatprep.subr.mxu0 0.0
  %1126 = vmatpush1.msra.mxu0 0.0
  %1127 = vmatprep.subr.mxu0 0.0
  %1128 = vmatpush1.msra.mxu0 0.0
  %1129 = vmatprep.subr.mxu0 0.0
  %1130 = vmatpush1.msra.mxu0 0.0
  %1131 = vmatprep.subr.mxu0 0.0
  %1132 = vmatpush1.msra.mxu0 0.0
  %1133 = vmatprep.subr.mxu0 0.0
  %1134 = vmatpush1.msra.mxu0 0.0
  %1135 = vmatprep.subr.mxu0 0.0
  %1136 = vmatpush1.msra.mxu0 0.0
  %1137 = vmatprep.subr.mxu0 0.0
  %1138 = vmatpush1.msra.mxu0 0.0
  %1139 = vmatprep.subr.mxu0 0.0
  %1140 = vmatpush1.msra.mxu0 0.0
  %1141 = vmatprep.subr.mxu0 0.0
  %1142 = vmatpush1.msra.mxu0 0.0
  %1143 = vmatprep.subr.mxu0 0.0
  %1144 = vmatpush1.msra.mxu0 0.0
  %1145 = vmatprep.subr.mxu0 0.0
  %1146 = vmatpush1.msra.mxu0 0.0
  %1147 = vmatprep.subr.mxu0 0.0
  %1148 = vmatpush1.msra.mxu0 0.0
  %1149 = vmatprep.subr.mxu0 0.0
  %1150 = vmatpush1.msra.mxu0 0.0
  %1151 = vmatprep.subr.mxu0 0.0
  %1152 = vmatpush1.msra.mxu0 0.0
  %1153 = vmatprep.subr.mxu0 0.0
  %1154 = vmatpush1.msra.mxu0 0.0
  %1155 = vmatprep.subr.mxu0 0.0
  %1156 = vmatpush1.msra.mxu0 0.0
  %1157 = vmatprep.subr.mxu0 0.0
  %1158 = vmatpush1.msra.mxu0 0.0
  %1159 = vmatprep.subr.mxu0 0.0
  %1160 = vmatpush1.msra.mxu0 0.0
  %1161 = vmatprep.subr.mxu0 0.0
  %1162 = vmatpush1.msra.mxu0 0.0
  %1163 = vmatprep.subr.mxu0 0.0
  %1164 = vmatpush1.msra.mxu0 0.0
  %1165 = vmatprep.subr.mxu0 0.0
  %1166 = vmatpush1.msra.mxu0 0.0
  %1167 = vmatprep.subr.mxu0 0.0
  %1168 = vmatpush1.msra.mxu0 0.0
  %1169 = vmatprep.subr.mxu0 0.0
  %1170 = vmatpush1.msra.mxu0 0.0
  %1171 = vmatprep.subr.mxu0 0.0
  %1172 = vmatpush1.msra.mxu0 0.0
  %1173 = vmatprep.subr.mxu0 0.0
  %1174 = vmatpush1.msra.mxu0 0.0
  %1175 = vmatprep.subr.mxu0 0.0
  %1176 = vmatpush1.msra.mxu0 0.0
  %1177 = vmatprep.subr.mxu0 0.0
  %1178 = vmatpush1.msra.mxu0 0.0
  %1179 = vmatprep.mubr.f32.mxu0 0.0
  %1180 = vmatmul.mubr.f32.gmra.mrb[0].mxu0 %v1113
  %v1181 = vpop.f32.mrb[0].mxu0
  %v1182 = vadd.f32 %v1108, %v1181
  %v1183 = vpop.f32.mrb[0].mxu0
  %1184 = vdwg.mxu0
  %v1185 = vmax.f32 %v1182, 0.0
  %v1186 = vld [vmem:[%s6] sm:$0xff]
  %v1187 = vld [vmem:[%s6 + $0x8] sm:$0xff]
  %v1188 = vld [vmem:[%s6 + $0x10] sm:$0xff]
  %v1189 = vld [vmem:[%s6 + $0x18] sm:$0xff]
  %v1190 = vld [vmem:[%s6 + $0x20] sm:$0xff]
  %v1191 = vld [vmem:[%s6 + $0x28] sm:$0xff]
  %v1192 = vld [vmem:[%s6 + $0x30] sm:$0xff]
  %v1193 = vld [vmem:[%s6 + $0x38] sm:$0xff]
  %v1194 = vld [vmem:[%s6 + $0x40] sm:$0xff]
  %v1195 = vld [vmem:[%s6 + $0x48] sm:$0xff]
  %v1196 = vld [vmem:[%s6 + $0x50] sm:$0xff]
  %v1197 = vld [vmem:[%s6 + $0x58] sm:$0xff]
  %v1198 = vld [vmem:[%s6 + $0x60] sm:$0xff]
  %v1199 = vld [vmem:[%s6 + $0x68] sm:$0xff]
  %v1200 = vld [vmem:[%s6 + $0x70] sm:$0xff]
  %v1201 = vld [vmem:[%s6 + $0x78] sm:$0xff]
  %v1202 = vld [vmem:[%s7] sm:$0x1]
  %v1204 = vlaneseq
  %v1205 = vshrl.u32 %v1204, 7
  %v1206 = vsub.s32 0, %v1205
  %v1207 = vrot.slane %v1202, %v1206
  %1209 = vmatprep.subr.mxu0 0.0
  %1210 = vmatpush1.msra.mxu0 %v1186
  %1211 = vmatprep.subr.mxu0 0.0
  %1212 = vmatpush1.msra.mxu0 %v1187
  %1213 = vmatprep.subr.mxu0 0.0
  %1214 = vmatpush1.msra.mxu0 %v1188
  %1215 = vmatprep.subr.mxu0 0.0
  %1216 = vmatpush1.msra.mxu0 %v1189
  %1217 = vmatprep.subr.mxu0 0.0
  %1218 = vmatpush1.msra.mxu0 %v1190
  %1219 = vmatprep.subr.mxu0 0.0
  %1220 = vmatpush1.msra.mxu0 %v1191
  %1221 = vmatprep.subr.mxu0 0.0
  %1222 = vmatpush1.msra.mxu0 %v1192
  %1223 = vmatprep.subr.mxu0 0.0
  %1224 = vmatpush1.msra.mxu0 %v1193
  %1225 = vmatprep.subr.mxu0 0.0
  %1226 = vmatpush1.msra.mxu0 %v1194
  %1227 = vmatprep.subr.mxu0 0.0
  %1228 = vmatpush1.msra.mxu0 %v1195
  %1229 = vmatprep.subr.mxu0 0.0
  %1230 = vmatpush1.msra.mxu0 %v1196
  %1231 = vmatprep.subr.mxu0 0.0
  %1232 = vmatpush1.msra.mxu0 %v1197
  %1233 = vmatprep.subr.mxu0 0.0
  %1234 = vmatpush1.msra.mxu0 %v1198
  %1235 = vmatprep.subr.mxu0 0.0
  %1236 = vmatpush1.msra.mxu0 %v1199
  %1237 = vmatprep.subr.mxu0 0.0
  %1238 = vmatpush1.msra.mxu0 %v1200
  %1239 = vmatprep.subr.mxu0 0.0
  %1240 = vmatpush1.msra.mxu0 %v1201
  %1241 = vmatprep.subr.mxu0 0.0
  %1242 = vmatpush1.msra.mxu0 0.0
  %1243 = vmatprep.subr.mxu0 0.0
  %1244 = vmatpush1.msra.mxu0 0.0
  %1245 = vmatprep.subr.mxu0 0.0
  %1246 = vmatpush1.msra.mxu0 0.0
  %1247 = vmatprep.subr.mxu0 0.0
  %1248 = vmatpush1.msra.mxu0 0.0
  %1249 = vmatprep.subr.mxu0 0.0
  %1250 = vmatpush1.msra.mxu0 0.0
  %1251 = vmatprep.subr.mxu0 0.0
  %1252 = vmatpush1.msra.mxu0 0.0
  %1253 = vmatprep.subr.mxu0 0.0
  %1254 = vmatpush1.msra.mxu0 0.0
  %1255 = vmatprep.subr.mxu0 0.0
  %1256 = vmatpush1.msra.mxu0 0.0
  %1257 = vmatprep.subr.mxu0 0.0
  %1258 = vmatpush1.msra.mxu0 0.0
  %1259 = vmatprep.subr.mxu0 0.0
  %1260 = vmatpush1.msra.mxu0 0.0
  %1261 = vmatprep.subr.mxu0 0.0
  %1262 = vmatpush1.msra.mxu0 0.0
  %1263 = vmatprep.subr.mxu0 0.0
  %1264 = vmatpush1.msra.mxu0 0.0
  %1265 = vmatprep.subr.mxu0 0.0
  %1266 = vmatpush1.msra.mxu0 0.0
  %1267 = vmatprep.subr.mxu0 0.0
  %1268 = vmatpush1.msra.mxu0 0.0
  %1269 = vmatprep.subr.mxu0 0.0
  %1270 = vmatpush1.msra.mxu0 0.0
  %1271 = vmatprep.subr.mxu0 0.0
  %1272 = vmatpush1.msra.mxu0 0.0
  %1273 = vmatprep.mubr.f32.mxu0 0.0
  %1274 = vmatmul.mubr.f32.gmra.mrb[0].mxu0 %v1185
  %v1275 = vpop.f32.mrb[0].mxu0
  %v1276 = vadd.f32 %v1207, %v1275
  %v1277 = vpop.f32.mrb[0].mxu0
  %1278 = vdwg.mxu0
  %v1279 = vmax.f32 %v1276, 0.0
  %v1280 = vld [vmem:[%s8] sm:$0xff]
  %v1281 = vld [vmem:[%s8 + $0x8] sm:$0xff]
  %v1282 = vld [vmem:[%s8 + $0x10] sm:$0xff]
  %v1283 = vld [vmem:[%s8 + $0x18] sm:$0xff]
  %v1284 = vld [vmem:[%s8 + $0x20] sm:$0xff]
  %v1285 = vld [vmem:[%s8 + $0x28] sm:$0xff]
  %v1286 = vld [vmem:[%s8 + $0x30] sm:$0xff]
  %v1287 = vld [vmem:[%s8 + $0x38] sm:$0xff]
  %v1288 = vld [vmem:[#allocation2] sm:$0x1]
  %v1290 = vlaneseq
  %v1291 = vshrl.u32 %v1290, 7
  %v1292 = vsub.s32 0, %v1291
  %v1293 = vrot.slane %v1288, %v1292
  %vm1295 = vcmask 523264
  %v1297 = vsel %vm1295, %v1279, 0
  %1299 = vmatprep.subr.mxu0 0.0
  %1300 = vmatpush1.msra.mxu0 %v1280
  %1301 = vmatprep.subr.mxu0 0.0
  %1302 = vmatpush1.msra.mxu0 %v1281
  %1303 = vmatprep.subr.mxu0 0.0
  %1304 = vmatpush1.msra.mxu0 %v1282
  %1305 = vmatprep.subr.mxu0 0.0
  %1306 = vmatpush1.msra.mxu0 %v1283
  %1307 = vmatprep.subr.mxu0 0.0
  %1308 = vmatpush1.msra.mxu0 %v1284
  %1309 = vmatprep.subr.mxu0 0.0
  %1310 = vmatpush1.msra.mxu0 %v1285
  %1311 = vmatprep.subr.mxu0 0.0
  %1312 = vmatpush1.msra.mxu0 %v1286
  %1313 = vmatprep.subr.mxu0 0.0
  %1314 = vmatpush1.msra.mxu0 %v1287
  %1315 = vmatprep.subr.mxu0 0.0
  %1316 = vmatpush1.msra.mxu0 0.0
  %1317 = vmatprep.subr.mxu0 0.0
  %1318 = vmatpush1.msra.mxu0 0.0
  %1319 = vmatprep.subr.mxu0 0.0
  %1320 = vmatpush1.msra.mxu0 0.0
  %1321 = vmatprep.subr.mxu0 0.0
  %1322 = vmatpush1.msra.mxu0 0.0
  %1323 = vmatprep.subr.mxu0 0.0
  %1324 = vmatpush1.msra.mxu0 0.0
  %1325 = vmatprep.subr.mxu0 0.0
  %1326 = vmatpush1.msra.mxu0 0.0
  %1327 = vmatprep.subr.mxu0 0.0
  %1328 = vmatpush1.msra.mxu0 0.0
  %1329 = vmatprep.subr.mxu0 0.0
  %1330 = vmatpush1.msra.mxu0 0.0
  %1331 = vmatprep.subr.mxu0 0.0
  %1332 = vmatpush1.msra.mxu0 0.0
  %1333 = vmatprep.subr.mxu0 0.0
  %1334 = vmatpush1.msra.mxu0 0.0
  %1335 = vmatprep.subr.mxu0 0.0
  %1336 = vmatpush1.msra.mxu0 0.0
  %1337 = vmatprep.subr.mxu0 0.0
  %1338 = vmatpush1.msra.mxu0 0.0
  %1339 = vmatprep.subr.mxu0 0.0
  %1340 = vmatpush1.msra.mxu0 0.0
  %1341 = vmatprep.subr.mxu0 0.0
  %1342 = vmatpush1.msra.mxu0 0.0
  %1343 = vmatprep.subr.mxu0 0.0
  %1344 = vmatpush1.msra.mxu0 0.0
  %1345 = vmatprep.subr.mxu0 0.0
  %1346 = vmatpush1.msra.mxu0 0.0
  %1347 = vmatprep.subr.mxu0 0.0
  %1348 = vmatpush1.msra.mxu0 0.0
  %1349 = vmatprep.subr.mxu0 0.0
  %1350 = vmatpush1.msra.mxu0 0.0
  %1351 = vmatprep.subr.mxu0 0.0
  %1352 = vmatpush1.msra.mxu0 0.0
  %1353 = vmatprep.subr.mxu0 0.0
  %1354 = vmatpush1.msra.mxu0 0.0
  %1355 = vmatprep.subr.mxu0 0.0
  %1356 = vmatpush1.msra.mxu0 0.0
  %1357 = vmatprep.subr.mxu0 0.0
  %1358 = vmatpush1.msra.mxu0 0.0
  %1359 = vmatprep.subr.mxu0 0.0
  %1360 = vmatpush1.msra.mxu0 0.0
  %1361 = vmatprep.subr.mxu0 0.0
  %1362 = vmatpush1.msra.mxu0 0.0
  %1363 = vmatprep.mubr.f32.mxu0 0.0
  %1364 = vmatmul.mubr.f32.gmra.mrb[0].mxu0 %v1297
  %v1365 = vpop.f32.mrb[0].mxu0
  %v1366 = vadd.f32 %v1293, %v1365
  %v1367 = vpop.f32.mrb[0].mxu0
  %1368 = vdwg.mxu0
  %v1369 = vxor.u32 %v1366, 2147483648
  %v1370 = vmul.f32 %v1369, 1.442695
  %v1371 = vpow.pop %v1370
  %v1372 = vadd.f32 %v1371, 1.0
  %v1373 = vrcp.pop %v1372
  %v1374 = vmul.f32 1.0, %v1373
  %vm1375 = vcmask 7168
  %1376 = vst.msk [vmem:[%s10] sm:$0xff] %vm1375, %v1374
  // Predicated region
  $region42: #{tpu_custom_call.1} parent=0 // pred_check
    _
  $region43: #{tpu_custom_call.1} parent=0 // pred_check_branch
    %1378 = sbr.rel (0) target = $region45
  $region44: #{tpu_custom_call.1} parent=0 // pred_region
    _
  $region45: #{tpu_custom_call.1} parent=0 // pred_fallthru
    _
  // Predicated region
  $region46: #{tpu_custom_call.1} parent=0 // pred_check
    _
  $region47: #{tpu_custom_call.1} parent=0 // pred_check_branch
    %1380 = sbr.rel (0) target = $region49
  $region48: #{tpu_custom_call.1} parent=0 // pred_region
    _
  $region49: #{tpu_custom_call.1} parent=0 // pred_fallthru
    _

</llo_original>
